<compile_context>
chip_gen: v5e
topology: v5e:2x2
jax: 0.10.0
libtpu: 0.0.40
codegen_flags: <defaults>
</compile_context>

<pallas_src>
import functools

import jax
import jax.numpy as jnp
import numpy as np
from jax import lax
from jax.experimental import pallas as pl
from jax.experimental.pallas import tpu as pltpu


def _round_up(x, m):
    return (x + m - 1) // m * m


def _fused_stacked_lstm_kernel(*refs, hidden_sizes, chunk, seq_len, unroll):
    """One grid step == `chunk` timesteps of the WHOLE layer stack for one batch block.

    refs layout (L = num layers):
      refs[0]                    x_ref   (chunk, bb, Din)       time-major input chunk
      refs[1 : 1+3L]             W_l (Din_l, G_l), U_l (H_l, G_l), b_l (1, G_l) per layer
      refs[1+3L]                 y_ref   (chunk, bb, H_last)    last-layer hidden states
      refs[2+3L : 2+4L]          lh_l    (bb, H_l)              hidden state at t == T-1
      refs[2+4L]                 gx_scr  (chunk, bb, G_0)       layer-0 input projection
      refs[3+4L : 3+6L]          h_l, c_l (bb, H_l) f32 carries across the time axis
    Gate columns are packed [i | f | o | c] (each H_l wide), matching myLSTMCell
    (W1/U1->i, W2/U2->f, W3/U3->o, W4/U4->c_tilda); columns >= 4H are zero padding.
    """
    L = len(hidden_sizes)
    x_ref = refs[0]
    w_refs = refs[1:1 + 3 * L]
    y_ref = refs[1 + 3 * L]
    lh_refs = refs[2 + 3 * L:2 + 4 * L]
    gx_scr = refs[2 + 4 * L]
    hc_scrs = refs[3 + 4 * L:3 + 6 * L]

    t_blk = pl.program_id(1)

    @pl.when(t_blk == 0)
    def _():
        for s in hc_scrs:
            s[...] = jnp.zeros_like(s)

    bb = x_ref.shape[1]
    din0 = x_ref.shape[2]
    g0 = w_refs[0].shape[1]

    # Layer-0 input projection hoisted out of the recurrence and fused into the
    # kernel: one large MXU matmul per grid step, result parked in VMEM scratch
    # (no f32 gates tensor round trip through HBM).
    x2 = x_ref[...].reshape(chunk * bb, din0)
    gx = jnp.dot(x2, w_refs[0][...], preferred_element_type=jnp.float32) + w_refs[2][...]
    gx_scr[...] = gx.reshape(chunk, bb, g0)

    # Whole-vreg gate nonlinearity: sigmoid(x)=0.5*(tanh(0.5x)+1) on the i|f|o
    # lanes, plain tanh on the c_tilda lanes -> one EUP op for all four gates.
    scales, sig_masks = [], []
    for H in hidden_sizes:
        col = lax.broadcasted_iota(jnp.int32, (1, 4 * H), 1)
        is_sig = col < 3 * H
        sig_masks.append(is_sig)
        scales.append(jnp.where(is_sig, jnp.float32(0.5), jnp.float32(1.0)))

    init = tuple((hc_scrs[2 * l][...], hc_scrs[2 * l + 1][...]) for l in range(L))

    def step(t, carries):
        new_carries = []
        inp = None
        for l, H in enumerate(hidden_sizes):
            h_prev, c_prev = carries[l]
            if l == 0:
                # Only the small recurrent matmul stays in the serial chain.
                z = gx_scr[t] + jnp.dot(h_prev, w_refs[1][...],
                                        preferred_element_type=jnp.float32)
            else:
                z = (jnp.dot(inp, w_refs[3 * l][...],
                             preferred_element_type=jnp.float32)
                     + jnp.dot(h_prev, w_refs[3 * l + 1][...],
                               preferred_element_type=jnp.float32)
                     + w_refs[3 * l + 2][...])
            zz = z[:, :4 * H]                       # drop gate-block lane padding (if any)
            th = jnp.tanh(zz * scales[l])           # single EUP transcendental, all gates
            gates = jnp.where(sig_masks[l], 0.5 * (th + 1.0), th)
            i_g = gates[:, 0 * H:1 * H]
            f_g = gates[:, 1 * H:2 * H]
            o_g = gates[:, 2 * H:3 * H]
            c_t = gates[:, 3 * H:4 * H]
            c_new = f_g * c_prev + i_g * c_t
            h_new = o_g * jnp.tanh(c_new)
            new_carries.append((h_new, c_new))
            inp = h_new                             # feeds the next layer this timestep

        y_ref[t] = inp.astype(y_ref.dtype)          # last layer's hidden state

        # Record every layer's hidden state at the REAL last timestep (T-1);
        # padded timesteps beyond T never overwrite it.
        gt = t_blk * chunk + t

        @pl.when(gt == seq_len - 1)
        def _():
            for l in range(L):
                lh_refs[l][...] = new_carries[l][0].astype(lh_refs[l].dtype)

        return tuple(new_carries)

    final = lax.fori_loop(0, chunk, step, init, unroll=unroll)
    for l in range(L):
        hc_scrs[2 * l][...] = final[l][0]
        hc_scrs[2 * l + 1][...] = final[l][1]


def init_lstm_params(key, input_size, hidden_layer_sizes):
    """Raw per-gate params matching myLSTMCell init (wRank=None, uRanks=None):
       W1..W4, U1..U4 ~ 0.1*N(0,1); all biases = 1. Gate order [i|f|o|c]."""
    raw = []
    in_size = input_size
    for H in hidden_layer_sizes:
        key, kw, ku = jax.random.split(key, 3)
        Ws = 0.1 * jax.random.normal(kw, (4, in_size, H), dtype=jnp.float32)
        Us = 0.1 * jax.random.normal(ku, (4, H, H), dtype=jnp.float32)
        b = jnp.ones((4, 1, H), dtype=jnp.float32)
        raw.append((Ws, Us, b))
        in_size = H
    return raw


def stack_params(raw):
    """Unpadded column-stacked [i|f|o|c] params, for the pure-JAX reference."""
    out = []
    for Ws, Us, b in raw:
        out.append((jnp.concatenate(list(Ws), axis=1),
                    jnp.concatenate(list(Us), axis=1),
                    jnp.concatenate(list(b), axis=1)))
    return out


def pack_params(raw):
    """Column-stacked [i|f|o|c] params with ONLY the concatenated 4H gate block
       lane-padded to a multiple of 128 (no per-gate padding; for H=32 there is
       no padding at all).  Zero pad columns contribute nothing to the gates."""
    packed = []
    for Ws, Us, b in raw:
        H = Ws.shape[2]
        G = 4 * H
        Gp = _round_up(G, 128)
        W = jnp.concatenate(list(Ws), axis=1)        # (in_size, 4H)
        U = jnp.concatenate(list(Us), axis=1)        # (H, 4H)
        bias = jnp.concatenate(list(b), axis=1)      # (1, 4H)
        if Gp != G:
            W = jnp.pad(W, ((0, 0), (0, Gp - G)))
            U = jnp.pad(U, ((0, 0), (0, Gp - G)))
            bias = jnp.pad(bias, ((0, 0), (0, Gp - G)))
        packed.append((W, U, bias))
    return packed


def my_lstm_forward(x_btd, params_packed, hidden_layer_sizes, *, time_chunk=32):
    """Equivalent of myLSTM.forward with batch_first=True.

    x_btd : (B, T, input_size) f32
    returns (x_out (B, T, H_last), hiddens_cat (B, sum(H)))
    """
    B, T, Din = x_btd.shape
    L = len(hidden_layer_sizes)
    H_last = hidden_layer_sizes[-1]
    g0 = params_packed[0][0].shape[1]

    # Batch blocking: >= 2 blocks as soon as B >= 9 so both v7x TensorCores get
    # work via the 'parallel' batch axis; single 8-row block for tiny batches.
    if B <= 8:
        bb, Bp = 8, 8
    elif B <= 256:
        bb = _round_up((B + 1) // 2, 8)
        Bp = 2 * bb
    else:
        bb = 128
        Bp = _round_up(B, 128)

    tc = max(1, min(time_chunk, T))
    Tp = _round_up(T, tc)
    # Full unroll only for the small case; partial unroll bounds vreg pressure.
    unroll = True if (bb <= 16 and tc <= 16) else min(8, tc)

    # Single small re-layout of x to time-major; everything else stays in VMEM.
    x_tbd = jnp.transpose(x_btd, (1, 0, 2))
    x_tbd = jnp.pad(x_tbd, ((0, Tp - T), (0, Bp - B), (0, 0)))

    # ---- Cost estimate (advisory) -------------------------------------------
    in_sizes = [Din] + list(hidden_layer_sizes[:-1])
    flops = 0
    trans = 0
    bytes_acc = Tp * Bp * Din * 4 + Tp * Bp * H_last * 4
    for l, H in enumerate(hidden_layer_sizes):
        flops += 2 * Tp * Bp * (in_sizes[l] + H) * 4 * H + 8 * Tp * Bp * H
        trans += 5 * Tp * Bp * H
        bytes_acc += Bp * H * 4
    for (W, U, bias) in params_packed:
        bytes_acc += 4 * (int(W.size) + int(U.size) + int(bias.size))
    cost = pl.CostEstimate(flops=int(flops), transcendentals=int(trans),
                           bytes_accessed=int(bytes_acc))

    # ---- Per-generation VMEM budget -----------------------------------------
    needed = 2 * tc * bb * Din * 4 + 2 * tc * bb * H_last * 4     # x / y (double-buffered)
    needed += tc * bb * g0 * 4                                    # gx scratch
    for (W, U, bias) in params_packed:                            # weights (double-buffered)
        needed += 2 * 4 * (int(W.size) + int(U.size) + int(bias.size))
    for H in hidden_layer_sizes:
        needed += 2 * bb * H * 4                                  # last-hidden out blocks
        needed += 2 * bb * H * 4                                  # h/c scratch
    try:
        cap = max(32 * 1024 * 1024,
                  int(pltpu.get_tpu_info().vmem_capacity_bytes) - 16 * 1024 * 1024)
    except Exception:
        cap = 64 * 1024 * 1024      # conservative fallback, safe on v7x's 64 MiB
    vmem_limit = int(min(max(32 * 1024 * 1024, needed * 2), cap))

    # ---- Specs ---------------------------------------------------------------
    in_specs = [pl.BlockSpec((tc, bb, Din), lambda b, t: (t, b, 0))]
    for (W, U, bias) in params_packed:
        # Grid-invariant, VMEM-resident weights.
        # TODO(synk): pipeline_mode=pl.Buffered(1) to single-buffer them for very
        # large hidden sizes.
        in_specs.append(pl.BlockSpec(W.shape, lambda b, t: (0, 0)))
        in_specs.append(pl.BlockSpec(U.shape, lambda b, t: (0, 0)))
        in_specs.append(pl.BlockSpec(bias.shape, lambda b, t: (0, 0)))

    out_specs = (pl.BlockSpec((tc, bb, H_last), lambda b, t: (t, b, 0)),)
    out_specs += tuple(pl.BlockSpec((bb, H), lambda b, t: (b, 0))
                       for H in hidden_layer_sizes)
    out_shape = (jax.ShapeDtypeStruct((Tp, Bp, H_last), jnp.float32),)
    out_shape += tuple(jax.ShapeDtypeStruct((Bp, H), jnp.float32)
                       for H in hidden_layer_sizes)

    scratch_shapes = [pltpu.VMEM((tc, bb, g0), jnp.float32)]
    for H in hidden_layer_sizes:
        scratch_shapes += [pltpu.VMEM((bb, H), jnp.float32),   # h carry
                           pltpu.VMEM((bb, H), jnp.float32)]   # c carry

    kernel = functools.partial(_fused_stacked_lstm_kernel,
                               hidden_sizes=tuple(hidden_layer_sizes),
                               chunk=tc, seq_len=T, unroll=unroll)

    grid_spec = pltpu.PrefetchScalarGridSpec(
        num_scalar_prefetch=0,
        grid=(Bp // bb, Tp // tc),
        in_specs=in_specs,
        out_specs=out_specs,
        scratch_shapes=scratch_shapes,
    )

    outs = pl.pallas_call(
        kernel,
        out_shape=out_shape,
        grid_spec=grid_spec,
        compiler_params=pltpu.CompilerParams(
            # batch blocks are independent (megacore-shardable on v7x);
            # the time axis carries h/c state and must stay sequential.
            dimension_semantics=("parallel", "arbitrary"),
            vmem_limit_bytes=vmem_limit,
        ),
        cost_estimate=cost,
    )(x_tbd, *[a for p in params_packed for a in p])

    y = outs[0]
    lhs = outs[1:]
    x_out = jnp.transpose(y[:T, :B, :], (1, 0, 2))            # back to (B, T, H_last)
    hiddens = jnp.concatenate([lh[:B, :] for lh in lhs], axis=-1)
    return x_out, hiddens


def my_lstm_reference(x_btd, params, hidden_layer_sizes):
    """Pure-JAX reference (mirrors the PyTorch loop) for correctness checking."""
    x = x_btd
    last_hiddens = []
    for (W, U, b), H in zip(params, hidden_layer_sizes):
        B = x.shape[0]
        h = jnp.zeros((B, H), jnp.float32)
        c = jnp.zeros((B, H), jnp.float32)
        outs = []
        for t in range(x.shape[1]):
            z = x[:, t, :] @ W + h @ U + b
            i_g = jax.nn.sigmoid(z[:, 0 * H:1 * H])
            f_g = jax.nn.sigmoid(z[:, 1 * H:2 * H])
            o_g = jax.nn.sigmoid(z[:, 2 * H:3 * H])
            ct = jnp.tanh(z[:, 3 * H:4 * H])
            c = f_g * c + i_g * ct
            h = o_g * jnp.tanh(c)
            outs.append(h)
        x = jnp.stack(outs, axis=1)
        last_hiddens.append(h)
    return x, jnp.concatenate(last_hiddens, axis=-1)


if __name__ == "__main__":
    # Small shapes consistent with the module: batch=2, seq=8, input=16, hidden=[32, 32]
    B, T, D = 2, 8, 16
    hidden_layer_sizes = [32, 32]

    key = jax.random.PRNGKey(0)
    key, kx = jax.random.split(key)
    x = jax.random.normal(kx, (B, T, D), dtype=jnp.float32)

    raw_params = init_lstm_params(key, D, hidden_layer_sizes)
    params_ref = stack_params(raw_params)
    params_pack = pack_params(raw_params)

    fwd = jax.jit(functools.partial(my_lstm_forward,
                                    hidden_layer_sizes=hidden_layer_sizes))
    out_x, out_h = fwd(x, params_pack)
    out_x = jax.block_until_ready(out_x)
    out_h = jax.block_until_ready(out_h)

    ref_x, ref_h = my_lstm_reference(x, params_ref, hidden_layer_sizes)

    assert out_x.shape == (B, T, hidden_layer_sizes[-1])
    assert out_h.shape == (B, sum(hidden_layer_sizes))
    np.testing.assert_allclose(np.asarray(out_x), np.asarray(ref_x), atol=1e-4, rtol=1e-4)
    np.testing.assert_allclose(np.asarray(out_h), np.asarray(ref_h), atol=1e-4, rtol=1e-4)

    print("KERNEL_OK")
</pallas_src>

<mosaic_0001>
module attributes {stable_mosaic.version = 11 : i64} {
  func.func @_fused_stacked_lstm_kernel(%arg0: i32, %arg1: i32, %arg2: memref<8x8x16xf32, #tpu.memory_space<vmem>>, %arg3: memref<16x128xf32, #tpu.memory_space<vmem>>, %arg4: memref<32x128xf32, #tpu.memory_space<vmem>>, %arg5: memref<1x128xf32, #tpu.memory_space<vmem>>, %arg6: memref<32x128xf32, #tpu.memory_space<vmem>>, %arg7: memref<32x128xf32, #tpu.memory_space<vmem>>, %arg8: memref<1x128xf32, #tpu.memory_space<vmem>>, %arg9: memref<8x8x32xf32, #tpu.memory_space<vmem>>, %arg10: memref<8x32xf32, #tpu.memory_space<vmem>>, %arg11: memref<8x32xf32, #tpu.memory_space<vmem>>, %arg12: memref<8x8x128xf32, #tpu.memory_space<vmem>>, %arg13: memref<8x32xf32, #tpu.memory_space<vmem>>, %arg14: memref<8x32xf32, #tpu.memory_space<vmem>>, %arg15: memref<8x32xf32, #tpu.memory_space<vmem>>, %arg16: memref<8x32xf32, #tpu.memory_space<vmem>>) attributes {dimension_semantics = [#tpu.dimension_semantics<parallel>, #tpu.dimension_semantics<arbitrary>], iteration_bounds = array<i64: 1, 1>, scalar_prefetch = 0 : i64, scratch_operands = 5 : i64, tpu.core_type = #tpu.core_type<tc>, window_params = [{transform_indices = @transform_0, window_bounds = array<i64: 8, 8, 16>}, {pipeline_mode = #tpu.pipeline_mode<synchronous>, transform_indices = @transform_1, window_bounds = array<i64: 16, 128>}, {pipeline_mode = #tpu.pipeline_mode<synchronous>, transform_indices = @transform_2, window_bounds = array<i64: 32, 128>}, {pipeline_mode = #tpu.pipeline_mode<synchronous>, transform_indices = @transform_3, window_bounds = array<i64: 1, 128>}, {pipeline_mode = #tpu.pipeline_mode<synchronous>, transform_indices = @transform_4, window_bounds = array<i64: 32, 128>}, {pipeline_mode = #tpu.pipeline_mode<synchronous>, transform_indices = @transform_5, window_bounds = array<i64: 32, 128>}, {pipeline_mode = #tpu.pipeline_mode<synchronous>, transform_indices = @transform_6, window_bounds = array<i64: 1, 128>}, {transform_indices = @transform_7, window_bounds = array<i64: 8, 8, 32>}, {transform_indices = @transform_8, window_bounds = array<i64: 8, 32>}, {transform_indices = @transform_9, window_bounds = array<i64: 8, 32>}]} {
    %c0_i32 = arith.constant 0 : i32
    %0 = arith.cmpi eq, %arg1, %c0_i32 : i32
    %1 = arith.extui %0 : i1 to i32
    %c0_i32_0 = arith.constant 0 : i32
    %2 = arith.cmpi ne, %1, %c0_i32_0 : i32
    scf.if %2 {
      %cst_208 = arith.constant 0.000000e+00 : f32
      %520 = vector.broadcast %cst_208 : f32 to vector<8x32xf32>
      %c0_209 = arith.constant 0 : index
      %c0_210 = arith.constant 0 : index
      %521 = vector.load %arg13[%c0_209, %c0_210] : memref<8x32xf32, #tpu.memory_space<vmem>>, vector<8x32xf32>
      tpu.vector_store %arg13[%c0_209, %c0_210], %520 {strides = array<i32>} : memref<8x32xf32, #tpu.memory_space<vmem>>, vector<8x32xf32>,
      %cst_211 = arith.constant 0.000000e+00 : f32
      %522 = vector.broadcast %cst_211 : f32 to vector<8x32xf32>
      %c0_212 = arith.constant 0 : index
      %c0_213 = arith.constant 0 : index
      %523 = vector.load %arg14[%c0_212, %c0_213] : memref<8x32xf32, #tpu.memory_space<vmem>>, vector<8x32xf32>
      tpu.vector_store %arg14[%c0_212, %c0_213], %522 {strides = array<i32>} : memref<8x32xf32, #tpu.memory_space<vmem>>, vector<8x32xf32>,
      %cst_214 = arith.constant 0.000000e+00 : f32
      %524 = vector.broadcast %cst_214 : f32 to vector<8x32xf32>
      %c0_215 = arith.constant 0 : index
      %c0_216 = arith.constant 0 : index
      %525 = vector.load %arg15[%c0_215, %c0_216] : memref<8x32xf32, #tpu.memory_space<vmem>>, vector<8x32xf32>
      tpu.vector_store %arg15[%c0_215, %c0_216], %524 {strides = array<i32>} : memref<8x32xf32, #tpu.memory_space<vmem>>, vector<8x32xf32>,
      %cst_217 = arith.constant 0.000000e+00 : f32
      %526 = vector.broadcast %cst_217 : f32 to vector<8x32xf32>
      %c0_218 = arith.constant 0 : index
      %c0_219 = arith.constant 0 : index
      %527 = vector.load %arg16[%c0_218, %c0_219] : memref<8x32xf32, #tpu.memory_space<vmem>>, vector<8x32xf32>
      tpu.vector_store %arg16[%c0_218, %c0_219], %526 {strides = array<i32>} : memref<8x32xf32, #tpu.memory_space<vmem>>, vector<8x32xf32>,
    } else {
    }
    %c0 = arith.constant 0 : index
    %c0_1 = arith.constant 0 : index
    %c0_2 = arith.constant 0 : index
    %3 = vector.load %arg2[%c0, %c0_1, %c0_2] : memref<8x8x16xf32, #tpu.memory_space<vmem>>, vector<8x8x16xf32>
    %4 = vector.shape_cast %3 : vector<8x8x16xf32> to vector<64x16xf32>
    %c0_3 = arith.constant 0 : index
    %c0_4 = arith.constant 0 : index
    %5 = vector.load %arg3[%c0_3, %c0_4] : memref<16x128xf32, #tpu.memory_space<vmem>>, vector<16x128xf32>
    %cst = arith.constant dense<0.000000e+00> : vector<64x128xf32>
    %6 = tpu.matmul %4, %5, %cst {dimension_numbers = #tpu.dot_dimension_numbers<[1], [0], [0], [1], [0, 0, 1, 1], [], []>} : vector<64x16xf32>, vector<16x128xf32>, vector<64x128xf32> -> vector<64x128xf32>
    %c0_5 = arith.constant 0 : index
    %c0_6 = arith.constant 0 : index
    %7 = vector.load %arg5[%c0_5, %c0_6] : memref<1x128xf32, #tpu.memory_space<vmem>>, vector<1x128xf32>
    %8 = vector.broadcast %7 : vector<1x128xf32> to vector<64x128xf32>
    %9 = arith.addf %6, %8 : vector<64x128xf32>
    %10 = vector.shape_cast %9 : vector<64x128xf32> to vector<8x8x128xf32>
    %c0_7 = arith.constant 0 : index
    %c0_8 = arith.constant 0 : index
    %c0_9 = arith.constant 0 : index
    %11 = vector.load %arg12[%c0_7, %c0_8, %c0_9] : memref<8x8x128xf32, #tpu.memory_space<vmem>>, vector<8x8x128xf32>
    tpu.vector_store %arg12[%c0_7, %c0_8, %c0_9], %10 {strides = array<i32>} : memref<8x8x128xf32, #tpu.memory_space<vmem>>, vector<8x8x128xf32>,
    %12 = tpu.iota {dimensions = array<i32: 1>} : vector<1x128xi32>
    %c96_i32 = arith.constant 96 : i32
    %13 = vector.broadcast %c96_i32 : i32 to vector<1x128xi32>
    %14 = arith.cmpi slt, %12, %13 : vector<1x128xi32>
    %cst_10 = arith.constant 5.000000e-01 : f32
    %cst_11 = arith.constant 1.000000e+00 : f32
    %15 = vector.broadcast %cst_10 : f32 to vector<1x128xf32>
    %16 = vector.broadcast %cst_11 : f32 to vector<1x128xf32>
    %17 = arith.select %14, %15, %16 : vector<1x128xi1>, vector<1x128xf32>
    %18 = tpu.iota {dimensions = array<i32: 1>} : vector<1x128xi32>
    %c96_i32_12 = arith.constant 96 : i32
    %19 = vector.broadcast %c96_i32_12 : i32 to vector<1x128xi32>
    %20 = arith.cmpi slt, %18, %19 : vector<1x128xi32>
    %cst_13 = arith.constant 5.000000e-01 : f32
    %cst_14 = arith.constant 1.000000e+00 : f32
    %21 = vector.broadcast %cst_13 : f32 to vector<1x128xf32>
    %22 = vector.broadcast %cst_14 : f32 to vector<1x128xf32>
    %23 = arith.select %20, %21, %22 : vector<1x128xi1>, vector<1x128xf32>
    %c0_15 = arith.constant 0 : index
    %c0_16 = arith.constant 0 : index
    %24 = vector.load %arg13[%c0_15, %c0_16] : memref<8x32xf32, #tpu.memory_space<vmem>>, vector<8x32xf32>
    %c0_17 = arith.constant 0 : index
    %c0_18 = arith.constant 0 : index
    %25 = vector.load %arg14[%c0_17, %c0_18] : memref<8x32xf32, #tpu.memory_space<vmem>>, vector<8x32xf32>
    %c0_19 = arith.constant 0 : index
    %c0_20 = arith.constant 0 : index
    %26 = vector.load %arg15[%c0_19, %c0_20] : memref<8x32xf32, #tpu.memory_space<vmem>>, vector<8x32xf32>
    %c0_21 = arith.constant 0 : index
    %c0_22 = arith.constant 0 : index
    %27 = vector.load %arg16[%c0_21, %c0_22] : memref<8x32xf32, #tpu.memory_space<vmem>>, vector<8x32xf32>
    %c0_i32_23 = arith.constant 0 : i32
    %28 = arith.index_cast %c0_i32_23 : i32 to index
    %c0_24 = arith.constant 0 : index
    %c0_25 = arith.constant 0 : index
    %29 = vector.load %arg12[%28, %c0_24, %c0_25] : memref<8x8x128xf32, #tpu.memory_space<vmem>>, vector<1x8x128xf32>
    %30 = vector.shape_cast %29 : vector<1x8x128xf32> to vector<8x128xf32>
    %c0_26 = arith.constant 0 : index
    %c0_27 = arith.constant 0 : index
    %31 = vector.load %arg4[%c0_26, %c0_27] : memref<32x128xf32, #tpu.memory_space<vmem>>, vector<32x128xf32>
    %cst_28 = arith.constant dense<0.000000e+00> : vector<8x128xf32>
    %32 = tpu.matmul %24, %31, %cst_28 {dimension_numbers = #tpu.dot_dimension_numbers<[1], [0], [0], [1], [0, 0, 1, 1], [], []>} : vector<8x32xf32>, vector<32x128xf32>, vector<8x128xf32> -> vector<8x128xf32>
    %33 = arith.addf %30, %32 : vector<8x128xf32>
    %34 = vector.broadcast %17 : vector<1x128xf32> to vector<8x128xf32>
    %35 = arith.mulf %33, %34 : vector<8x128xf32>
    %36 = math.tanh %35 : vector<8x128xf32>
    %cst_29 = arith.constant 1.000000e+00 : f32
    %37 = vector.broadcast %cst_29 : f32 to vector<8x128xf32>
    %38 = arith.addf %36, %37 : vector<8x128xf32>
    %cst_30 = arith.constant 5.000000e-01 : f32
    %39 = vector.broadcast %cst_30 : f32 to vector<8x128xf32>
    %40 = arith.mulf %39, %38 : vector<8x128xf32>
    %41 = vector.shape_cast %14 : vector<1x128xi1> to vector<1x128xi1>
    %42 = vector.broadcast %41 : vector<1x128xi1> to vector<8x128xi1>
    %43 = arith.select %42, %40, %36 : vector<8x128xi1>, vector<8x128xf32>
    %44 = vector.extract_strided_slice %43 {offsets = [0, 0], sizes = [8, 32], strides = [1, 1]} : vector<8x128xf32> to vector<8x32xf32>
    %45 = vector.extract_strided_slice %43 {offsets = [0, 32], sizes = [8, 32], strides = [1, 1]} : vector<8x128xf32> to vector<8x32xf32>
    %46 = vector.extract_strided_slice %43 {offsets = [0, 64], sizes = [8, 32], strides = [1, 1]} : vector<8x128xf32> to vector<8x32xf32>
    %47 = vector.extract_strided_slice %43 {offsets = [0, 96], sizes = [8, 32], strides = [1, 1]} : vector<8x128xf32> to vector<8x32xf32>
    %48 = arith.mulf %45, %25 : vector<8x32xf32>
    %49 = arith.mulf %44, %47 : vector<8x32xf32>
    %50 = arith.addf %48, %49 : vector<8x32xf32>
    %51 = math.tanh %50 : vector<8x32xf32>
    %52 = arith.mulf %46, %51 : vector<8x32xf32>
    %c0_31 = arith.constant 0 : index
    %c0_32 = arith.constant 0 : index
    %53 = vector.load %arg6[%c0_31, %c0_32] : memref<32x128xf32, #tpu.memory_space<vmem>>, vector<32x128xf32>
    %cst_33 = arith.constant dense<0.000000e+00> : vector<8x128xf32>
    %54 = tpu.matmul %52, %53, %cst_33 {dimension_numbers = #tpu.dot_dimension_numbers<[1], [0], [0], [1], [0, 0, 1, 1], [], []>} : vector<8x32xf32>, vector<32x128xf32>, vector<8x128xf32> -> vector<8x128xf32>
    %c0_34 = arith.constant 0 : index
    %c0_35 = arith.constant 0 : index
    %55 = vector.load %arg7[%c0_34, %c0_35] : memref<32x128xf32, #tpu.memory_space<vmem>>, vector<32x128xf32>
    %cst_36 = arith.constant dense<0.000000e+00> : vector<8x128xf32>
    %56 = tpu.matmul %26, %55, %cst_36 {dimension_numbers = #tpu.dot_dimension_numbers<[1], [0], [0], [1], [0, 0, 1, 1], [], []>} : vector<8x32xf32>, vector<32x128xf32>, vector<8x128xf32> -> vector<8x128xf32>
    %57 = arith.addf %54, %56 : vector<8x128xf32>
    %c0_37 = arith.constant 0 : index
    %c0_38 = arith.constant 0 : index
    %58 = vector.load %arg8[%c0_37, %c0_38] : memref<1x128xf32, #tpu.memory_space<vmem>>, vector<1x128xf32>
    %59 = vector.broadcast %58 : vector<1x128xf32> to vector<8x128xf32>
    %60 = arith.addf %57, %59 : vector<8x128xf32>
    %61 = vector.broadcast %23 : vector<1x128xf32> to vector<8x128xf32>
    %62 = arith.mulf %60, %61 : vector<8x128xf32>
    %63 = math.tanh %62 : vector<8x128xf32>
    %cst_39 = arith.constant 1.000000e+00 : f32
    %64 = vector.broadcast %cst_39 : f32 to vector<8x128xf32>
    %65 = arith.addf %63, %64 : vector<8x128xf32>
    %cst_40 = arith.constant 5.000000e-01 : f32
    %66 = vector.broadcast %cst_40 : f32 to vector<8x128xf32>
    %67 = arith.mulf %66, %65 : vector<8x128xf32>
    %68 = vector.shape_cast %20 : vector<1x128xi1> to vector<1x128xi1>
    %69 = vector.broadcast %68 : vector<1x128xi1> to vector<8x128xi1>
    %70 = arith.select %69, %67, %63 : vector<8x128xi1>, vector<8x128xf32>
    %71 = vector.extract_strided_slice %70 {offsets = [0, 0], sizes = [8, 32], strides = [1, 1]} : vector<8x128xf32> to vector<8x32xf32>
    %72 = vector.extract_strided_slice %70 {offsets = [0, 32], sizes = [8, 32], strides = [1, 1]} : vector<8x128xf32> to vector<8x32xf32>
    %73 = vector.extract_strided_slice %70 {offsets = [0, 64], sizes = [8, 32], strides = [1, 1]} : vector<8x128xf32> to vector<8x32xf32>
    %74 = vector.extract_strided_slice %70 {offsets = [0, 96], sizes = [8, 32], strides = [1, 1]} : vector<8x128xf32> to vector<8x32xf32>
    %75 = arith.mulf %72, %27 : vector<8x32xf32>
    %76 = arith.mulf %71, %74 : vector<8x32xf32>
    %77 = arith.addf %75, %76 : vector<8x32xf32>
    %78 = math.tanh %77 : vector<8x32xf32>
    %79 = arith.mulf %73, %78 : vector<8x32xf32>
    %80 = arith.index_cast %c0_i32_23 : i32 to index
    %c0_41 = arith.constant 0 : index
    %c0_42 = arith.constant 0 : index
    %81 = vector.load %arg9[%80, %c0_41, %c0_42] : memref<8x8x32xf32, #tpu.memory_space<vmem>>, vector<1x8x32xf32>
    %82 = vector.shape_cast %81 : vector<1x8x32xf32> to vector<8x32xf32>
    %83 = vector.shape_cast %79 : vector<8x32xf32> to vector<1x8x32xf32>
    tpu.vector_store %arg9[%80, %c0_41, %c0_42], %83 {strides = array<i32>} : memref<8x8x32xf32, #tpu.memory_space<vmem>>, vector<1x8x32xf32>,
    %c8_i32 = arith.constant 8 : i32
    %84 = arith.muli %arg1, %c8_i32 : i32
    %85 = arith.addi %84, %c0_i32_23 : i32
    %c7_i32 = arith.constant 7 : i32
    %86 = arith.cmpi eq, %85, %c7_i32 : i32
    %87 = arith.extui %86 : i1 to i32
    %c0_i32_43 = arith.constant 0 : i32
    %88 = arith.cmpi ne, %87, %c0_i32_43 : i32
    scf.if %88 {
      %c0_208 = arith.constant 0 : index
      %c0_209 = arith.constant 0 : index
      %520 = vector.load %arg10[%c0_208, %c0_209] : memref<8x32xf32, #tpu.memory_space<vmem>>, vector<8x32xf32>
      tpu.vector_store %arg10[%c0_208, %c0_209], %52 {strides = array<i32>} : memref<8x32xf32, #tpu.memory_space<vmem>>, vector<8x32xf32>,
      %c0_210 = arith.constant 0 : index
      %c0_211 = arith.constant 0 : index
      %521 = vector.load %arg11[%c0_210, %c0_211] : memref<8x32xf32, #tpu.memory_space<vmem>>, vector<8x32xf32>
      tpu.vector_store %arg11[%c0_210, %c0_211], %79 {strides = array<i32>} : memref<8x32xf32, #tpu.memory_space<vmem>>, vector<8x32xf32>,
    } else {
    }
    %c1_i32 = arith.constant 1 : i32
    %89 = arith.index_cast %c1_i32 : i32 to index
    %c0_44 = arith.constant 0 : index
    %c0_45 = arith.constant 0 : index
    %90 = vector.load %arg12[%89, %c0_44, %c0_45] : memref<8x8x128xf32, #tpu.memory_space<vmem>>, vector<1x8x128xf32>
    %91 = vector.shape_cast %90 : vector<1x8x128xf32> to vector<8x128xf32>
    %c0_46 = arith.constant 0 : index
    %c0_47 = arith.constant 0 : index
    %92 = vector.load %arg4[%c0_46, %c0_47] : memref<32x128xf32, #tpu.memory_space<vmem>>, vector<32x128xf32>
    %cst_48 = arith.constant dense<0.000000e+00> : vector<8x128xf32>
    %93 = tpu.matmul %52, %92, %cst_48 {dimension_numbers = #tpu.dot_dimension_numbers<[1], [0], [0], [1], [0, 0, 1, 1], [], []>} : vector<8x32xf32>, vector<32x128xf32>, vector<8x128xf32> -> vector<8x128xf32>
    %94 = arith.addf %91, %93 : vector<8x128xf32>
    %95 = vector.broadcast %17 : vector<1x128xf32> to vector<8x128xf32>
    %96 = arith.mulf %94, %95 : vector<8x128xf32>
    %97 = math.tanh %96 : vector<8x128xf32>
    %cst_49 = arith.constant 1.000000e+00 : f32
    %98 = vector.broadcast %cst_49 : f32 to vector<8x128xf32>
    %99 = arith.addf %97, %98 : vector<8x128xf32>
    %cst_50 = arith.constant 5.000000e-01 : f32
    %100 = vector.broadcast %cst_50 : f32 to vector<8x128xf32>
    %101 = arith.mulf %100, %99 : vector<8x128xf32>
    %102 = vector.shape_cast %14 : vector<1x128xi1> to vector<1x128xi1>
    %103 = vector.broadcast %102 : vector<1x128xi1> to vector<8x128xi1>
    %104 = arith.select %103, %101, %97 : vector<8x128xi1>, vector<8x128xf32>
    %105 = vector.extract_strided_slice %104 {offsets = [0, 0], sizes = [8, 32], strides = [1, 1]} : vector<8x128xf32> to vector<8x32xf32>
    %106 = vector.extract_strided_slice %104 {offsets = [0, 32], sizes = [8, 32], strides = [1, 1]} : vector<8x128xf32> to vector<8x32xf32>
    %107 = vector.extract_strided_slice %104 {offsets = [0, 64], sizes = [8, 32], strides = [1, 1]} : vector<8x128xf32> to vector<8x32xf32>
    %108 = vector.extract_strided_slice %104 {offsets = [0, 96], sizes = [8, 32], strides = [1, 1]} : vector<8x128xf32> to vector<8x32xf32>
    %109 = arith.mulf %106, %50 : vector<8x32xf32>
    %110 = arith.mulf %105, %108 : vector<8x32xf32>
    %111 = arith.addf %109, %110 : vector<8x32xf32>
    %112 = math.tanh %111 : vector<8x32xf32>
    %113 = arith.mulf %107, %112 : vector<8x32xf32>
    %c0_51 = arith.constant 0 : index
    %c0_52 = arith.constant 0 : index
    %114 = vector.load %arg6[%c0_51, %c0_52] : memref<32x128xf32, #tpu.memory_space<vmem>>, vector<32x128xf32>
    %cst_53 = arith.constant dense<0.000000e+00> : vector<8x128xf32>
    %115 = tpu.matmul %113, %114, %cst_53 {dimension_numbers = #tpu.dot_dimension_numbers<[1], [0], [0], [1], [0, 0, 1, 1], [], []>} : vector<8x32xf32>, vector<32x128xf32>, vector<8x128xf32> -> vector<8x128xf32>
    %c0_54 = arith.constant 0 : index
    %c0_55 = arith.constant 0 : index
    %116 = vector.load %arg7[%c0_54, %c0_55] : memref<32x128xf32, #tpu.memory_space<vmem>>, vector<32x128xf32>
    %cst_56 = arith.constant dense<0.000000e+00> : vector<8x128xf32>
    %117 = tpu.matmul %79, %116, %cst_56 {dimension_numbers = #tpu.dot_dimension_numbers<[1], [0], [0], [1], [0, 0, 1, 1], [], []>} : vector<8x32xf32>, vector<32x128xf32>, vector<8x128xf32> -> vector<8x128xf32>
    %118 = arith.addf %115, %117 : vector<8x128xf32>
    %c0_57 = arith.constant 0 : index
    %c0_58 = arith.constant 0 : index
    %119 = vector.load %arg8[%c0_57, %c0_58] : memref<1x128xf32, #tpu.memory_space<vmem>>, vector<1x128xf32>
    %120 = vector.broadcast %119 : vector<1x128xf32> to vector<8x128xf32>
    %121 = arith.addf %118, %120 : vector<8x128xf32>
    %122 = vector.broadcast %23 : vector<1x128xf32> to vector<8x128xf32>
    %123 = arith.mulf %121, %122 : vector<8x128xf32>
    %124 = math.tanh %123 : vector<8x128xf32>
    %cst_59 = arith.constant 1.000000e+00 : f32
    %125 = vector.broadcast %cst_59 : f32 to vector<8x128xf32>
    %126 = arith.addf %124, %125 : vector<8x128xf32>
    %cst_60 = arith.constant 5.000000e-01 : f32
    %127 = vector.broadcast %cst_60 : f32 to vector<8x128xf32>
    %128 = arith.mulf %127, %126 : vector<8x128xf32>
    %129 = vector.shape_cast %20 : vector<1x128xi1> to vector<1x128xi1>
    %130 = vector.broadcast %129 : vector<1x128xi1> to vector<8x128xi1>
    %131 = arith.select %130, %128, %124 : vector<8x128xi1>, vector<8x128xf32>
    %132 = vector.extract_strided_slice %131 {offsets = [0, 0], sizes = [8, 32], strides = [1, 1]} : vector<8x128xf32> to vector<8x32xf32>
    %133 = vector.extract_strided_slice %131 {offsets = [0, 32], sizes = [8, 32], strides = [1, 1]} : vector<8x128xf32> to vector<8x32xf32>
    %134 = vector.extract_strided_slice %131 {offsets = [0, 64], sizes = [8, 32], strides = [1, 1]} : vector<8x128xf32> to vector<8x32xf32>
    %135 = vector.extract_strided_slice %131 {offsets = [0, 96], sizes = [8, 32], strides = [1, 1]} : vector<8x128xf32> to vector<8x32xf32>
    %136 = arith.mulf %133, %77 : vector<8x32xf32>
    %137 = arith.mulf %132, %135 : vector<8x32xf32>
    %138 = arith.addf %136, %137 : vector<8x32xf32>
    %139 = math.tanh %138 : vector<8x32xf32>
    %140 = arith.mulf %134, %139 : vector<8x32xf32>
    %141 = arith.index_cast %c1_i32 : i32 to index
    %c0_61 = arith.constant 0 : index
    %c0_62 = arith.constant 0 : index
    %142 = vector.load %arg9[%141, %c0_61, %c0_62] : memref<8x8x32xf32, #tpu.memory_space<vmem>>, vector<1x8x32xf32>
    %143 = vector.shape_cast %142 : vector<1x8x32xf32> to vector<8x32xf32>
    %144 = vector.shape_cast %140 : vector<8x32xf32> to vector<1x8x32xf32>
    tpu.vector_store %arg9[%141, %c0_61, %c0_62], %144 {strides = array<i32>} : memref<8x8x32xf32, #tpu.memory_space<vmem>>, vector<1x8x32xf32>,
    %c8_i32_63 = arith.constant 8 : i32
    %145 = arith.muli %arg1, %c8_i32_63 : i32
    %146 = arith.addi %145, %c1_i32 : i32
    %c7_i32_64 = arith.constant 7 : i32
    %147 = arith.cmpi eq, %146, %c7_i32_64 : i32
    %148 = arith.extui %147 : i1 to i32
    %c0_i32_65 = arith.constant 0 : i32
    %149 = arith.cmpi ne, %148, %c0_i32_65 : i32
    scf.if %149 {
      %c0_208 = arith.constant 0 : index
      %c0_209 = arith.constant 0 : index
      %520 = vector.load %arg10[%c0_208, %c0_209] : memref<8x32xf32, #tpu.memory_space<vmem>>, vector<8x32xf32>
      tpu.vector_store %arg10[%c0_208, %c0_209], %113 {strides = array<i32>} : memref<8x32xf32, #tpu.memory_space<vmem>>, vector<8x32xf32>,
      %c0_210 = arith.constant 0 : index
      %c0_211 = arith.constant 0 : index
      %521 = vector.load %arg11[%c0_210, %c0_211] : memref<8x32xf32, #tpu.memory_space<vmem>>, vector<8x32xf32>
      tpu.vector_store %arg11[%c0_210, %c0_211], %140 {strides = array<i32>} : memref<8x32xf32, #tpu.memory_space<vmem>>, vector<8x32xf32>,
    } else {
    }
    %c2_i32 = arith.constant 2 : i32
    %150 = arith.index_cast %c2_i32 : i32 to index
    %c0_66 = arith.constant 0 : index
    %c0_67 = arith.constant 0 : index
    %151 = vector.load %arg12[%150, %c0_66, %c0_67] : memref<8x8x128xf32, #tpu.memory_space<vmem>>, vector<1x8x128xf32>
    %152 = vector.shape_cast %151 : vector<1x8x128xf32> to vector<8x128xf32>
    %c0_68 = arith.constant 0 : index
    %c0_69 = arith.constant 0 : index
    %153 = vector.load %arg4[%c0_68, %c0_69] : memref<32x128xf32, #tpu.memory_space<vmem>>, vector<32x128xf32>
    %cst_70 = arith.constant dense<0.000000e+00> : vector<8x128xf32>
    %154 = tpu.matmul %113, %153, %cst_70 {dimension_numbers = #tpu.dot_dimension_numbers<[1], [0], [0], [1], [0, 0, 1, 1], [], []>} : vector<8x32xf32>, vector<32x128xf32>, vector<8x128xf32> -> vector<8x128xf32>
    %155 = arith.addf %152, %154 : vector<8x128xf32>
    %156 = vector.broadcast %17 : vector<1x128xf32> to vector<8x128xf32>
    %157 = arith.mulf %155, %156 : vector<8x128xf32>
    %158 = math.tanh %157 : vector<8x128xf32>
    %cst_71 = arith.constant 1.000000e+00 : f32
    %159 = vector.broadcast %cst_71 : f32 to vector<8x128xf32>
    %160 = arith.addf %158, %159 : vector<8x128xf32>
    %cst_72 = arith.constant 5.000000e-01 : f32
    %161 = vector.broadcast %cst_72 : f32 to vector<8x128xf32>
    %162 = arith.mulf %161, %160 : vector<8x128xf32>
    %163 = vector.shape_cast %14 : vector<1x128xi1> to vector<1x128xi1>
    %164 = vector.broadcast %163 : vector<1x128xi1> to vector<8x128xi1>
    %165 = arith.select %164, %162, %158 : vector<8x128xi1>, vector<8x128xf32>
    %166 = vector.extract_strided_slice %165 {offsets = [0, 0], sizes = [8, 32], strides = [1, 1]} : vector<8x128xf32> to vector<8x32xf32>
    %167 = vector.extract_strided_slice %165 {offsets = [0, 32], sizes = [8, 32], strides = [1, 1]} : vector<8x128xf32> to vector<8x32xf32>
    %168 = vector.extract_strided_slice %165 {offsets = [0, 64], sizes = [8, 32], strides = [1, 1]} : vector<8x128xf32> to vector<8x32xf32>
    %169 = vector.extract_strided_slice %165 {offsets = [0, 96], sizes = [8, 32], strides = [1, 1]} : vector<8x128xf32> to vector<8x32xf32>
    %170 = arith.mulf %167, %111 : vector<8x32xf32>
    %171 = arith.mulf %166, %169 : vector<8x32xf32>
    %172 = arith.addf %170, %171 : vector<8x32xf32>
    %173 = math.tanh %172 : vector<8x32xf32>
    %174 = arith.mulf %168, %173 : vector<8x32xf32>
    %c0_73 = arith.constant 0 : index
    %c0_74 = arith.constant 0 : index
    %175 = vector.load %arg6[%c0_73, %c0_74] : memref<32x128xf32, #tpu.memory_space<vmem>>, vector<32x128xf32>
    %cst_75 = arith.constant dense<0.000000e+00> : vector<8x128xf32>
    %176 = tpu.matmul %174, %175, %cst_75 {dimension_numbers = #tpu.dot_dimension_numbers<[1], [0], [0], [1], [0, 0, 1, 1], [], []>} : vector<8x32xf32>, vector<32x128xf32>, vector<8x128xf32> -> vector<8x128xf32>
    %c0_76 = arith.constant 0 : index
    %c0_77 = arith.constant 0 : index
    %177 = vector.load %arg7[%c0_76, %c0_77] : memref<32x128xf32, #tpu.memory_space<vmem>>, vector<32x128xf32>
    %cst_78 = arith.constant dense<0.000000e+00> : vector<8x128xf32>
    %178 = tpu.matmul %140, %177, %cst_78 {dimension_numbers = #tpu.dot_dimension_numbers<[1], [0], [0], [1], [0, 0, 1, 1], [], []>} : vector<8x32xf32>, vector<32x128xf32>, vector<8x128xf32> -> vector<8x128xf32>
    %179 = arith.addf %176, %178 : vector<8x128xf32>
    %c0_79 = arith.constant 0 : index
    %c0_80 = arith.constant 0 : index
    %180 = vector.load %arg8[%c0_79, %c0_80] : memref<1x128xf32, #tpu.memory_space<vmem>>, vector<1x128xf32>
    %181 = vector.broadcast %180 : vector<1x128xf32> to vector<8x128xf32>
    %182 = arith.addf %179, %181 : vector<8x128xf32>
    %183 = vector.broadcast %23 : vector<1x128xf32> to vector<8x128xf32>
    %184 = arith.mulf %182, %183 : vector<8x128xf32>
    %185 = math.tanh %184 : vector<8x128xf32>
    %cst_81 = arith.constant 1.000000e+00 : f32
    %186 = vector.broadcast %cst_81 : f32 to vector<8x128xf32>
    %187 = arith.addf %185, %186 : vector<8x128xf32>
    %cst_82 = arith.constant 5.000000e-01 : f32
    %188 = vector.broadcast %cst_82 : f32 to vector<8x128xf32>
    %189 = arith.mulf %188, %187 : vector<8x128xf32>
    %190 = vector.shape_cast %20 : vector<1x128xi1> to vector<1x128xi1>
    %191 = vector.broadcast %190 : vector<1x128xi1> to vector<8x128xi1>
    %192 = arith.select %191, %189, %185 : vector<8x128xi1>, vector<8x128xf32>
    %193 = vector.extract_strided_slice %192 {offsets = [0, 0], sizes = [8, 32], strides = [1, 1]} : vector<8x128xf32> to vector<8x32xf32>
    %194 = vector.extract_strided_slice %192 {offsets = [0, 32], sizes = [8, 32], strides = [1, 1]} : vector<8x128xf32> to vector<8x32xf32>
    %195 = vector.extract_strided_slice %192 {offsets = [0, 64], sizes = [8, 32], strides = [1, 1]} : vector<8x128xf32> to vector<8x32xf32>
    %196 = vector.extract_strided_slice %192 {offsets = [0, 96], sizes = [8, 32], strides = [1, 1]} : vector<8x128xf32> to vector<8x32xf32>
    %197 = arith.mulf %194, %138 : vector<8x32xf32>
    %198 = arith.mulf %193, %196 : vector<8x32xf32>
    %199 = arith.addf %197, %198 : vector<8x32xf32>
    %200 = math.tanh %199 : vector<8x32xf32>
    %201 = arith.mulf %195, %200 : vector<8x32xf32>
    %202 = arith.index_cast %c2_i32 : i32 to index
    %c0_83 = arith.constant 0 : index
    %c0_84 = arith.constant 0 : index
    %203 = vector.load %arg9[%202, %c0_83, %c0_84] : memref<8x8x32xf32, #tpu.memory_space<vmem>>, vector<1x8x32xf32>
    %204 = vector.shape_cast %203 : vector<1x8x32xf32> to vector<8x32xf32>
    %205 = vector.shape_cast %201 : vector<8x32xf32> to vector<1x8x32xf32>
    tpu.vector_store %arg9[%202, %c0_83, %c0_84], %205 {strides = array<i32>} : memref<8x8x32xf32, #tpu.memory_space<vmem>>, vector<1x8x32xf32>,
    %c8_i32_85 = arith.constant 8 : i32
    %206 = arith.muli %arg1, %c8_i32_85 : i32
    %207 = arith.addi %206, %c2_i32 : i32
    %c7_i32_86 = arith.constant 7 : i32
    %208 = arith.cmpi eq, %207, %c7_i32_86 : i32
    %209 = arith.extui %208 : i1 to i32
    %c0_i32_87 = arith.constant 0 : i32
    %210 = arith.cmpi ne, %209, %c0_i32_87 : i32
    scf.if %210 {
      %c0_208 = arith.constant 0 : index
      %c0_209 = arith.constant 0 : index
      %520 = vector.load %arg10[%c0_208, %c0_209] : memref<8x32xf32, #tpu.memory_space<vmem>>, vector<8x32xf32>
      tpu.vector_store %arg10[%c0_208, %c0_209], %174 {strides = array<i32>} : memref<8x32xf32, #tpu.memory_space<vmem>>, vector<8x32xf32>,
      %c0_210 = arith.constant 0 : index
      %c0_211 = arith.constant 0 : index
      %521 = vector.load %arg11[%c0_210, %c0_211] : memref<8x32xf32, #tpu.memory_space<vmem>>, vector<8x32xf32>
      tpu.vector_store %arg11[%c0_210, %c0_211], %201 {strides = array<i32>} : memref<8x32xf32, #tpu.memory_space<vmem>>, vector<8x32xf32>,
    } else {
    }
    %c3_i32 = arith.constant 3 : i32
    %211 = arith.index_cast %c3_i32 : i32 to index
    %c0_88 = arith.constant 0 : index
    %c0_89 = arith.constant 0 : index
    %212 = vector.load %arg12[%211, %c0_88, %c0_89] : memref<8x8x128xf32, #tpu.memory_space<vmem>>, vector<1x8x128xf32>
    %213 = vector.shape_cast %212 : vector<1x8x128xf32> to vector<8x128xf32>
    %c0_90 = arith.constant 0 : index
    %c0_91 = arith.constant 0 : index
    %214 = vector.load %arg4[%c0_90, %c0_91] : memref<32x128xf32, #tpu.memory_space<vmem>>, vector<32x128xf32>
    %cst_92 = arith.constant dense<0.000000e+00> : vector<8x128xf32>
    %215 = tpu.matmul %174, %214, %cst_92 {dimension_numbers = #tpu.dot_dimension_numbers<[1], [0], [0], [1], [0, 0, 1, 1], [], []>} : vector<8x32xf32>, vector<32x128xf32>, vector<8x128xf32> -> vector<8x128xf32>
    %216 = arith.addf %213, %215 : vector<8x128xf32>
    %217 = vector.broadcast %17 : vector<1x128xf32> to vector<8x128xf32>
    %218 = arith.mulf %216, %217 : vector<8x128xf32>
    %219 = math.tanh %218 : vector<8x128xf32>
    %cst_93 = arith.constant 1.000000e+00 : f32
    %220 = vector.broadcast %cst_93 : f32 to vector<8x128xf32>
    %221 = arith.addf %219, %220 : vector<8x128xf32>
    %cst_94 = arith.constant 5.000000e-01 : f32
    %222 = vector.broadcast %cst_94 : f32 to vector<8x128xf32>
    %223 = arith.mulf %222, %221 : vector<8x128xf32>
    %224 = vector.shape_cast %14 : vector<1x128xi1> to vector<1x128xi1>
    %225 = vector.broadcast %224 : vector<1x128xi1> to vector<8x128xi1>
    %226 = arith.select %225, %223, %219 : vector<8x128xi1>, vector<8x128xf32>
    %227 = vector.extract_strided_slice %226 {offsets = [0, 0], sizes = [8, 32], strides = [1, 1]} : vector<8x128xf32> to vector<8x32xf32>
    %228 = vector.extract_strided_slice %226 {offsets = [0, 32], sizes = [8, 32], strides = [1, 1]} : vector<8x128xf32> to vector<8x32xf32>
    %229 = vector.extract_strided_slice %226 {offsets = [0, 64], sizes = [8, 32], strides = [1, 1]} : vector<8x128xf32> to vector<8x32xf32>
    %230 = vector.extract_strided_slice %226 {offsets = [0, 96], sizes = [8, 32], strides = [1, 1]} : vector<8x128xf32> to vector<8x32xf32>
    %231 = arith.mulf %228, %172 : vector<8x32xf32>
    %232 = arith.mulf %227, %230 : vector<8x32xf32>
    %233 = arith.addf %231, %232 : vector<8x32xf32>
    %234 = math.tanh %233 : vector<8x32xf32>
    %235 = arith.mulf %229, %234 : vector<8x32xf32>
    %c0_95 = arith.constant 0 : index
    %c0_96 = arith.constant 0 : index
    %236 = vector.load %arg6[%c0_95, %c0_96] : memref<32x128xf32, #tpu.memory_space<vmem>>, vector<32x128xf32>
    %cst_97 = arith.constant dense<0.000000e+00> : vector<8x128xf32>
    %237 = tpu.matmul %235, %236, %cst_97 {dimension_numbers = #tpu.dot_dimension_numbers<[1], [0], [0], [1], [0, 0, 1, 1], [], []>} : vector<8x32xf32>, vector<32x128xf32>, vector<8x128xf32> -> vector<8x128xf32>
    %c0_98 = arith.constant 0 : index
    %c0_99 = arith.constant 0 : index
    %238 = vector.load %arg7[%c0_98, %c0_99] : memref<32x128xf32, #tpu.memory_space<vmem>>, vector<32x128xf32>
    %cst_100 = arith.constant dense<0.000000e+00> : vector<8x128xf32>
    %239 = tpu.matmul %201, %238, %cst_100 {dimension_numbers = #tpu.dot_dimension_numbers<[1], [0], [0], [1], [0, 0, 1, 1], [], []>} : vector<8x32xf32>, vector<32x128xf32>, vector<8x128xf32> -> vector<8x128xf32>
    %240 = arith.addf %237, %239 : vector<8x128xf32>
    %c0_101 = arith.constant 0 : index
    %c0_102 = arith.constant 0 : index
    %241 = vector.load %arg8[%c0_101, %c0_102] : memref<1x128xf32, #tpu.memory_space<vmem>>, vector<1x128xf32>
    %242 = vector.broadcast %241 : vector<1x128xf32> to vector<8x128xf32>
    %243 = arith.addf %240, %242 : vector<8x128xf32>
    %244 = vector.broadcast %23 : vector<1x128xf32> to vector<8x128xf32>
    %245 = arith.mulf %243, %244 : vector<8x128xf32>
    %246 = math.tanh %245 : vector<8x128xf32>
    %cst_103 = arith.constant 1.000000e+00 : f32
    %247 = vector.broadcast %cst_103 : f32 to vector<8x128xf32>
    %248 = arith.addf %246, %247 : vector<8x128xf32>
    %cst_104 = arith.constant 5.000000e-01 : f32
    %249 = vector.broadcast %cst_104 : f32 to vector<8x128xf32>
    %250 = arith.mulf %249, %248 : vector<8x128xf32>
    %251 = vector.shape_cast %20 : vector<1x128xi1> to vector<1x128xi1>
    %252 = vector.broadcast %251 : vector<1x128xi1> to vector<8x128xi1>
    %253 = arith.select %252, %250, %246 : vector<8x128xi1>, vector<8x128xf32>
    %254 = vector.extract_strided_slice %253 {offsets = [0, 0], sizes = [8, 32], strides = [1, 1]} : vector<8x128xf32> to vector<8x32xf32>
    %255 = vector.extract_strided_slice %253 {offsets = [0, 32], sizes = [8, 32], strides = [1, 1]} : vector<8x128xf32> to vector<8x32xf32>
    %256 = vector.extract_strided_slice %253 {offsets = [0, 64], sizes = [8, 32], strides = [1, 1]} : vector<8x128xf32> to vector<8x32xf32>
    %257 = vector.extract_strided_slice %253 {offsets = [0, 96], sizes = [8, 32], strides = [1, 1]} : vector<8x128xf32> to vector<8x32xf32>
    %258 = arith.mulf %255, %199 : vector<8x32xf32>
    %259 = arith.mulf %254, %257 : vector<8x32xf32>
    %260 = arith.addf %258, %259 : vector<8x32xf32>
    %261 = math.tanh %260 : vector<8x32xf32>
    %262 = arith.mulf %256, %261 : vector<8x32xf32>
    %263 = arith.index_cast %c3_i32 : i32 to index
    %c0_105 = arith.constant 0 : index
    %c0_106 = arith.constant 0 : index
    %264 = vector.load %arg9[%263, %c0_105, %c0_106] : memref<8x8x32xf32, #tpu.memory_space<vmem>>, vector<1x8x32xf32>
    %265 = vector.shape_cast %264 : vector<1x8x32xf32> to vector<8x32xf32>
    %266 = vector.shape_cast %262 : vector<8x32xf32> to vector<1x8x32xf32>
    tpu.vector_store %arg9[%263, %c0_105, %c0_106], %266 {strides = array<i32>} : memref<8x8x32xf32, #tpu.memory_space<vmem>>, vector<1x8x32xf32>,
    %c8_i32_107 = arith.constant 8 : i32
    %267 = arith.muli %arg1, %c8_i32_107 : i32
    %268 = arith.addi %267, %c3_i32 : i32
    %c7_i32_108 = arith.constant 7 : i32
    %269 = arith.cmpi eq, %268, %c7_i32_108 : i32
    %270 = arith.extui %269 : i1 to i32
    %c0_i32_109 = arith.constant 0 : i32
    %271 = arith.cmpi ne, %270, %c0_i32_109 : i32
    scf.if %271 {
      %c0_208 = arith.constant 0 : index
      %c0_209 = arith.constant 0 : index
      %520 = vector.load %arg10[%c0_208, %c0_209] : memref<8x32xf32, #tpu.memory_space<vmem>>, vector<8x32xf32>
      tpu.vector_store %arg10[%c0_208, %c0_209], %235 {strides = array<i32>} : memref<8x32xf32, #tpu.memory_space<vmem>>, vector<8x32xf32>,
      %c0_210 = arith.constant 0 : index
      %c0_211 = arith.constant 0 : index
      %521 = vector.load %arg11[%c0_210, %c0_211] : memref<8x32xf32, #tpu.memory_space<vmem>>, vector<8x32xf32>
      tpu.vector_store %arg11[%c0_210, %c0_211], %262 {strides = array<i32>} : memref<8x32xf32, #tpu.memory_space<vmem>>, vector<8x32xf32>,
    } else {
    }
    %c4_i32 = arith.constant 4 : i32
    %272 = arith.index_cast %c4_i32 : i32 to index
    %c0_110 = arith.constant 0 : index
    %c0_111 = arith.constant 0 : index
    %273 = vector.load %arg12[%272, %c0_110, %c0_111] : memref<8x8x128xf32, #tpu.memory_space<vmem>>, vector<1x8x128xf32>
    %274 = vector.shape_cast %273 : vector<1x8x128xf32> to vector<8x128xf32>
    %c0_112 = arith.constant 0 : index
    %c0_113 = arith.constant 0 : index
    %275 = vector.load %arg4[%c0_112, %c0_113] : memref<32x128xf32, #tpu.memory_space<vmem>>, vector<32x128xf32>
    %cst_114 = arith.constant dense<0.000000e+00> : vector<8x128xf32>
    %276 = tpu.matmul %235, %275, %cst_114 {dimension_numbers = #tpu.dot_dimension_numbers<[1], [0], [0], [1], [0, 0, 1, 1], [], []>} : vector<8x32xf32>, vector<32x128xf32>, vector<8x128xf32> -> vector<8x128xf32>
    %277 = arith.addf %274, %276 : vector<8x128xf32>
    %278 = vector.broadcast %17 : vector<1x128xf32> to vector<8x128xf32>
    %279 = arith.mulf %277, %278 : vector<8x128xf32>
    %280 = math.tanh %279 : vector<8x128xf32>
    %cst_115 = arith.constant 1.000000e+00 : f32
    %281 = vector.broadcast %cst_115 : f32 to vector<8x128xf32>
    %282 = arith.addf %280, %281 : vector<8x128xf32>
    %cst_116 = arith.constant 5.000000e-01 : f32
    %283 = vector.broadcast %cst_116 : f32 to vector<8x128xf32>
    %284 = arith.mulf %283, %282 : vector<8x128xf32>
    %285 = vector.shape_cast %14 : vector<1x128xi1> to vector<1x128xi1>
    %286 = vector.broadcast %285 : vector<1x128xi1> to vector<8x128xi1>
    %287 = arith.select %286, %284, %280 : vector<8x128xi1>, vector<8x128xf32>
    %288 = vector.extract_strided_slice %287 {offsets = [0, 0], sizes = [8, 32], strides = [1, 1]} : vector<8x128xf32> to vector<8x32xf32>
    %289 = vector.extract_strided_slice %287 {offsets = [0, 32], sizes = [8, 32], strides = [1, 1]} : vector<8x128xf32> to vector<8x32xf32>
    %290 = vector.extract_strided_slice %287 {offsets = [0, 64], sizes = [8, 32], strides = [1, 1]} : vector<8x128xf32> to vector<8x32xf32>
    %291 = vector.extract_strided_slice %287 {offsets = [0, 96], sizes = [8, 32], strides = [1, 1]} : vector<8x128xf32> to vector<8x32xf32>
    %292 = arith.mulf %289, %233 : vector<8x32xf32>
    %293 = arith.mulf %288, %291 : vector<8x32xf32>
    %294 = arith.addf %292, %293 : vector<8x32xf32>
    %295 = math.tanh %294 : vector<8x32xf32>
    %296 = arith.mulf %290, %295 : vector<8x32xf32>
    %c0_117 = arith.constant 0 : index
    %c0_118 = arith.constant 0 : index
    %297 = vector.load %arg6[%c0_117, %c0_118] : memref<32x128xf32, #tpu.memory_space<vmem>>, vector<32x128xf32>
    %cst_119 = arith.constant dense<0.000000e+00> : vector<8x128xf32>
    %298 = tpu.matmul %296, %297, %cst_119 {dimension_numbers = #tpu.dot_dimension_numbers<[1], [0], [0], [1], [0, 0, 1, 1], [], []>} : vector<8x32xf32>, vector<32x128xf32>, vector<8x128xf32> -> vector<8x128xf32>
    %c0_120 = arith.constant 0 : index
    %c0_121 = arith.constant 0 : index
    %299 = vector.load %arg7[%c0_120, %c0_121] : memref<32x128xf32, #tpu.memory_space<vmem>>, vector<32x128xf32>
    %cst_122 = arith.constant dense<0.000000e+00> : vector<8x128xf32>
    %300 = tpu.matmul %262, %299, %cst_122 {dimension_numbers = #tpu.dot_dimension_numbers<[1], [0], [0], [1], [0, 0, 1, 1], [], []>} : vector<8x32xf32>, vector<32x128xf32>, vector<8x128xf32> -> vector<8x128xf32>
    %301 = arith.addf %298, %300 : vector<8x128xf32>
    %c0_123 = arith.constant 0 : index
    %c0_124 = arith.constant 0 : index
    %302 = vector.load %arg8[%c0_123, %c0_124] : memref<1x128xf32, #tpu.memory_space<vmem>>, vector<1x128xf32>
    %303 = vector.broadcast %302 : vector<1x128xf32> to vector<8x128xf32>
    %304 = arith.addf %301, %303 : vector<8x128xf32>
    %305 = vector.broadcast %23 : vector<1x128xf32> to vector<8x128xf32>
    %306 = arith.mulf %304, %305 : vector<8x128xf32>
    %307 = math.tanh %306 : vector<8x128xf32>
    %cst_125 = arith.constant 1.000000e+00 : f32
    %308 = vector.broadcast %cst_125 : f32 to vector<8x128xf32>
    %309 = arith.addf %307, %308 : vector<8x128xf32>
    %cst_126 = arith.constant 5.000000e-01 : f32
    %310 = vector.broadcast %cst_126 : f32 to vector<8x128xf32>
    %311 = arith.mulf %310, %309 : vector<8x128xf32>
    %312 = vector.shape_cast %20 : vector<1x128xi1> to vector<1x128xi1>
    %313 = vector.broadcast %312 : vector<1x128xi1> to vector<8x128xi1>
    %314 = arith.select %313, %311, %307 : vector<8x128xi1>, vector<8x128xf32>
    %315 = vector.extract_strided_slice %314 {offsets = [0, 0], sizes = [8, 32], strides = [1, 1]} : vector<8x128xf32> to vector<8x32xf32>
    %316 = vector.extract_strided_slice %314 {offsets = [0, 32], sizes = [8, 32], strides = [1, 1]} : vector<8x128xf32> to vector<8x32xf32>
    %317 = vector.extract_strided_slice %314 {offsets = [0, 64], sizes = [8, 32], strides = [1, 1]} : vector<8x128xf32> to vector<8x32xf32>
    %318 = vector.extract_strided_slice %314 {offsets = [0, 96], sizes = [8, 32], strides = [1, 1]} : vector<8x128xf32> to vector<8x32xf32>
    %319 = arith.mulf %316, %260 : vector<8x32xf32>
    %320 = arith.mulf %315, %318 : vector<8x32xf32>
    %321 = arith.addf %319, %320 : vector<8x32xf32>
    %322 = math.tanh %321 : vector<8x32xf32>
    %323 = arith.mulf %317, %322 : vector<8x32xf32>
    %324 = arith.index_cast %c4_i32 : i32 to index
    %c0_127 = arith.constant 0 : index
    %c0_128 = arith.constant 0 : index
    %325 = vector.load %arg9[%324, %c0_127, %c0_128] : memref<8x8x32xf32, #tpu.memory_space<vmem>>, vector<1x8x32xf32>
    %326 = vector.shape_cast %325 : vector<1x8x32xf32> to vector<8x32xf32>
    %327 = vector.shape_cast %323 : vector<8x32xf32> to vector<1x8x32xf32>
    tpu.vector_store %arg9[%324, %c0_127, %c0_128], %327 {strides = array<i32>} : memref<8x8x32xf32, #tpu.memory_space<vmem>>, vector<1x8x32xf32>,
    %c8_i32_129 = arith.constant 8 : i32
    %328 = arith.muli %arg1, %c8_i32_129 : i32
    %329 = arith.addi %328, %c4_i32 : i32
    %c7_i32_130 = arith.constant 7 : i32
    %330 = arith.cmpi eq, %329, %c7_i32_130 : i32
    %331 = arith.extui %330 : i1 to i32
    %c0_i32_131 = arith.constant 0 : i32
    %332 = arith.cmpi ne, %331, %c0_i32_131 : i32
    scf.if %332 {
      %c0_208 = arith.constant 0 : index
      %c0_209 = arith.constant 0 : index
      %520 = vector.load %arg10[%c0_208, %c0_209] : memref<8x32xf32, #tpu.memory_space<vmem>>, vector<8x32xf32>
      tpu.vector_store %arg10[%c0_208, %c0_209], %296 {strides = array<i32>} : memref<8x32xf32, #tpu.memory_space<vmem>>, vector<8x32xf32>,
      %c0_210 = arith.constant 0 : index
      %c0_211 = arith.constant 0 : index
      %521 = vector.load %arg11[%c0_210, %c0_211] : memref<8x32xf32, #tpu.memory_space<vmem>>, vector<8x32xf32>
      tpu.vector_store %arg11[%c0_210, %c0_211], %323 {strides = array<i32>} : memref<8x32xf32, #tpu.memory_space<vmem>>, vector<8x32xf32>,
    } else {
    }
    %c5_i32 = arith.constant 5 : i32
    %333 = arith.index_cast %c5_i32 : i32 to index
    %c0_132 = arith.constant 0 : index
    %c0_133 = arith.constant 0 : index
    %334 = vector.load %arg12[%333, %c0_132, %c0_133] : memref<8x8x128xf32, #tpu.memory_space<vmem>>, vector<1x8x128xf32>
    %335 = vector.shape_cast %334 : vector<1x8x128xf32> to vector<8x128xf32>
    %c0_134 = arith.constant 0 : index
    %c0_135 = arith.constant 0 : index
    %336 = vector.load %arg4[%c0_134, %c0_135] : memref<32x128xf32, #tpu.memory_space<vmem>>, vector<32x128xf32>
    %cst_136 = arith.constant dense<0.000000e+00> : vector<8x128xf32>
    %337 = tpu.matmul %296, %336, %cst_136 {dimension_numbers = #tpu.dot_dimension_numbers<[1], [0], [0], [1], [0, 0, 1, 1], [], []>} : vector<8x32xf32>, vector<32x128xf32>, vector<8x128xf32> -> vector<8x128xf32>
    %338 = arith.addf %335, %337 : vector<8x128xf32>
    %339 = vector.broadcast %17 : vector<1x128xf32> to vector<8x128xf32>
    %340 = arith.mulf %338, %339 : vector<8x128xf32>
    %341 = math.tanh %340 : vector<8x128xf32>
    %cst_137 = arith.constant 1.000000e+00 : f32
    %342 = vector.broadcast %cst_137 : f32 to vector<8x128xf32>
    %343 = arith.addf %341, %342 : vector<8x128xf32>
    %cst_138 = arith.constant 5.000000e-01 : f32
    %344 = vector.broadcast %cst_138 : f32 to vector<8x128xf32>
    %345 = arith.mulf %344, %343 : vector<8x128xf32>
    %346 = vector.shape_cast %14 : vector<1x128xi1> to vector<1x128xi1>
    %347 = vector.broadcast %346 : vector<1x128xi1> to vector<8x128xi1>
    %348 = arith.select %347, %345, %341 : vector<8x128xi1>, vector<8x128xf32>
    %349 = vector.extract_strided_slice %348 {offsets = [0, 0], sizes = [8, 32], strides = [1, 1]} : vector<8x128xf32> to vector<8x32xf32>
    %350 = vector.extract_strided_slice %348 {offsets = [0, 32], sizes = [8, 32], strides = [1, 1]} : vector<8x128xf32> to vector<8x32xf32>
    %351 = vector.extract_strided_slice %348 {offsets = [0, 64], sizes = [8, 32], strides = [1, 1]} : vector<8x128xf32> to vector<8x32xf32>
    %352 = vector.extract_strided_slice %348 {offsets = [0, 96], sizes = [8, 32], strides = [1, 1]} : vector<8x128xf32> to vector<8x32xf32>
    %353 = arith.mulf %350, %294 : vector<8x32xf32>
    %354 = arith.mulf %349, %352 : vector<8x32xf32>
    %355 = arith.addf %353, %354 : vector<8x32xf32>
    %356 = math.tanh %355 : vector<8x32xf32>
    %357 = arith.mulf %351, %356 : vector<8x32xf32>
    %c0_139 = arith.constant 0 : index
    %c0_140 = arith.constant 0 : index
    %358 = vector.load %arg6[%c0_139, %c0_140] : memref<32x128xf32, #tpu.memory_space<vmem>>, vector<32x128xf32>
    %cst_141 = arith.constant dense<0.000000e+00> : vector<8x128xf32>
    %359 = tpu.matmul %357, %358, %cst_141 {dimension_numbers = #tpu.dot_dimension_numbers<[1], [0], [0], [1], [0, 0, 1, 1], [], []>} : vector<8x32xf32>, vector<32x128xf32>, vector<8x128xf32> -> vector<8x128xf32>
    %c0_142 = arith.constant 0 : index
    %c0_143 = arith.constant 0 : index
    %360 = vector.load %arg7[%c0_142, %c0_143] : memref<32x128xf32, #tpu.memory_space<vmem>>, vector<32x128xf32>
    %cst_144 = arith.constant dense<0.000000e+00> : vector<8x128xf32>
    %361 = tpu.matmul %323, %360, %cst_144 {dimension_numbers = #tpu.dot_dimension_numbers<[1], [0], [0], [1], [0, 0, 1, 1], [], []>} : vector<8x32xf32>, vector<32x128xf32>, vector<8x128xf32> -> vector<8x128xf32>
    %362 = arith.addf %359, %361 : vector<8x128xf32>
    %c0_145 = arith.constant 0 : index
    %c0_146 = arith.constant 0 : index
    %363 = vector.load %arg8[%c0_145, %c0_146] : memref<1x128xf32, #tpu.memory_space<vmem>>, vector<1x128xf32>
    %364 = vector.broadcast %363 : vector<1x128xf32> to vector<8x128xf32>
    %365 = arith.addf %362, %364 : vector<8x128xf32>
    %366 = vector.broadcast %23 : vector<1x128xf32> to vector<8x128xf32>
    %367 = arith.mulf %365, %366 : vector<8x128xf32>
    %368 = math.tanh %367 : vector<8x128xf32>
    %cst_147 = arith.constant 1.000000e+00 : f32
    %369 = vector.broadcast %cst_147 : f32 to vector<8x128xf32>
    %370 = arith.addf %368, %369 : vector<8x128xf32>
    %cst_148 = arith.constant 5.000000e-01 : f32
    %371 = vector.broadcast %cst_148 : f32 to vector<8x128xf32>
    %372 = arith.mulf %371, %370 : vector<8x128xf32>
    %373 = vector.shape_cast %20 : vector<1x128xi1> to vector<1x128xi1>
    %374 = vector.broadcast %373 : vector<1x128xi1> to vector<8x128xi1>
    %375 = arith.select %374, %372, %368 : vector<8x128xi1>, vector<8x128xf32>
    %376 = vector.extract_strided_slice %375 {offsets = [0, 0], sizes = [8, 32], strides = [1, 1]} : vector<8x128xf32> to vector<8x32xf32>
    %377 = vector.extract_strided_slice %375 {offsets = [0, 32], sizes = [8, 32], strides = [1, 1]} : vector<8x128xf32> to vector<8x32xf32>
    %378 = vector.extract_strided_slice %375 {offsets = [0, 64], sizes = [8, 32], strides = [1, 1]} : vector<8x128xf32> to vector<8x32xf32>
    %379 = vector.extract_strided_slice %375 {offsets = [0, 96], sizes = [8, 32], strides = [1, 1]} : vector<8x128xf32> to vector<8x32xf32>
    %380 = arith.mulf %377, %321 : vector<8x32xf32>
    %381 = arith.mulf %376, %379 : vector<8x32xf32>
    %382 = arith.addf %380, %381 : vector<8x32xf32>
    %383 = math.tanh %382 : vector<8x32xf32>
    %384 = arith.mulf %378, %383 : vector<8x32xf32>
    %385 = arith.index_cast %c5_i32 : i32 to index
    %c0_149 = arith.constant 0 : index
    %c0_150 = arith.constant 0 : index
    %386 = vector.load %arg9[%385, %c0_149, %c0_150] : memref<8x8x32xf32, #tpu.memory_space<vmem>>, vector<1x8x32xf32>
    %387 = vector.shape_cast %386 : vector<1x8x32xf32> to vector<8x32xf32>
    %388 = vector.shape_cast %384 : vector<8x32xf32> to vector<1x8x32xf32>
    tpu.vector_store %arg9[%385, %c0_149, %c0_150], %388 {strides = array<i32>} : memref<8x8x32xf32, #tpu.memory_space<vmem>>, vector<1x8x32xf32>,
    %c8_i32_151 = arith.constant 8 : i32
    %389 = arith.muli %arg1, %c8_i32_151 : i32
    %390 = arith.addi %389, %c5_i32 : i32
    %c7_i32_152 = arith.constant 7 : i32
    %391 = arith.cmpi eq, %390, %c7_i32_152 : i32
    %392 = arith.extui %391 : i1 to i32
    %c0_i32_153 = arith.constant 0 : i32
    %393 = arith.cmpi ne, %392, %c0_i32_153 : i32
    scf.if %393 {
      %c0_208 = arith.constant 0 : index
      %c0_209 = arith.constant 0 : index
      %520 = vector.load %arg10[%c0_208, %c0_209] : memref<8x32xf32, #tpu.memory_space<vmem>>, vector<8x32xf32>
      tpu.vector_store %arg10[%c0_208, %c0_209], %357 {strides = array<i32>} : memref<8x32xf32, #tpu.memory_space<vmem>>, vector<8x32xf32>,
      %c0_210 = arith.constant 0 : index
      %c0_211 = arith.constant 0 : index
      %521 = vector.load %arg11[%c0_210, %c0_211] : memref<8x32xf32, #tpu.memory_space<vmem>>, vector<8x32xf32>
      tpu.vector_store %arg11[%c0_210, %c0_211], %384 {strides = array<i32>} : memref<8x32xf32, #tpu.memory_space<vmem>>, vector<8x32xf32>,
    } else {
    }
    %c6_i32 = arith.constant 6 : i32
    %394 = arith.index_cast %c6_i32 : i32 to index
    %c0_154 = arith.constant 0 : index
    %c0_155 = arith.constant 0 : index
    %395 = vector.load %arg12[%394, %c0_154, %c0_155] : memref<8x8x128xf32, #tpu.memory_space<vmem>>, vector<1x8x128xf32>
    %396 = vector.shape_cast %395 : vector<1x8x128xf32> to vector<8x128xf32>
    %c0_156 = arith.constant 0 : index
    %c0_157 = arith.constant 0 : index
    %397 = vector.load %arg4[%c0_156, %c0_157] : memref<32x128xf32, #tpu.memory_space<vmem>>, vector<32x128xf32>
    %cst_158 = arith.constant dense<0.000000e+00> : vector<8x128xf32>
    %398 = tpu.matmul %357, %397, %cst_158 {dimension_numbers = #tpu.dot_dimension_numbers<[1], [0], [0], [1], [0, 0, 1, 1], [], []>} : vector<8x32xf32>, vector<32x128xf32>, vector<8x128xf32> -> vector<8x128xf32>
    %399 = arith.addf %396, %398 : vector<8x128xf32>
    %400 = vector.broadcast %17 : vector<1x128xf32> to vector<8x128xf32>
    %401 = arith.mulf %399, %400 : vector<8x128xf32>
    %402 = math.tanh %401 : vector<8x128xf32>
    %cst_159 = arith.constant 1.000000e+00 : f32
    %403 = vector.broadcast %cst_159 : f32 to vector<8x128xf32>
    %404 = arith.addf %402, %403 : vector<8x128xf32>
    %cst_160 = arith.constant 5.000000e-01 : f32
    %405 = vector.broadcast %cst_160 : f32 to vector<8x128xf32>
    %406 = arith.mulf %405, %404 : vector<8x128xf32>
    %407 = vector.shape_cast %14 : vector<1x128xi1> to vector<1x128xi1>
    %408 = vector.broadcast %407 : vector<1x128xi1> to vector<8x128xi1>
    %409 = arith.select %408, %406, %402 : vector<8x128xi1>, vector<8x128xf32>
    %410 = vector.extract_strided_slice %409 {offsets = [0, 0], sizes = [8, 32], strides = [1, 1]} : vector<8x128xf32> to vector<8x32xf32>
    %411 = vector.extract_strided_slice %409 {offsets = [0, 32], sizes = [8, 32], strides = [1, 1]} : vector<8x128xf32> to vector<8x32xf32>
    %412 = vector.extract_strided_slice %409 {offsets = [0, 64], sizes = [8, 32], strides = [1, 1]} : vector<8x128xf32> to vector<8x32xf32>
    %413 = vector.extract_strided_slice %409 {offsets = [0, 96], sizes = [8, 32], strides = [1, 1]} : vector<8x128xf32> to vector<8x32xf32>
    %414 = arith.mulf %411, %355 : vector<8x32xf32>
    %415 = arith.mulf %410, %413 : vector<8x32xf32>
    %416 = arith.addf %414, %415 : vector<8x32xf32>
    %417 = math.tanh %416 : vector<8x32xf32>
    %418 = arith.mulf %412, %417 : vector<8x32xf32>
    %c0_161 = arith.constant 0 : index
    %c0_162 = arith.constant 0 : index
    %419 = vector.load %arg6[%c0_161, %c0_162] : memref<32x128xf32, #tpu.memory_space<vmem>>, vector<32x128xf32>
    %cst_163 = arith.constant dense<0.000000e+00> : vector<8x128xf32>
    %420 = tpu.matmul %418, %419, %cst_163 {dimension_numbers = #tpu.dot_dimension_numbers<[1], [0], [0], [1], [0, 0, 1, 1], [], []>} : vector<8x32xf32>, vector<32x128xf32>, vector<8x128xf32> -> vector<8x128xf32>
    %c0_164 = arith.constant 0 : index
    %c0_165 = arith.constant 0 : index
    %421 = vector.load %arg7[%c0_164, %c0_165] : memref<32x128xf32, #tpu.memory_space<vmem>>, vector<32x128xf32>
    %cst_166 = arith.constant dense<0.000000e+00> : vector<8x128xf32>
    %422 = tpu.matmul %384, %421, %cst_166 {dimension_numbers = #tpu.dot_dimension_numbers<[1], [0], [0], [1], [0, 0, 1, 1], [], []>} : vector<8x32xf32>, vector<32x128xf32>, vector<8x128xf32> -> vector<8x128xf32>
    %423 = arith.addf %420, %422 : vector<8x128xf32>
    %c0_167 = arith.constant 0 : index
    %c0_168 = arith.constant 0 : index
    %424 = vector.load %arg8[%c0_167, %c0_168] : memref<1x128xf32, #tpu.memory_space<vmem>>, vector<1x128xf32>
    %425 = vector.broadcast %424 : vector<1x128xf32> to vector<8x128xf32>
    %426 = arith.addf %423, %425 : vector<8x128xf32>
    %427 = vector.broadcast %23 : vector<1x128xf32> to vector<8x128xf32>
    %428 = arith.mulf %426, %427 : vector<8x128xf32>
    %429 = math.tanh %428 : vector<8x128xf32>
    %cst_169 = arith.constant 1.000000e+00 : f32
    %430 = vector.broadcast %cst_169 : f32 to vector<8x128xf32>
    %431 = arith.addf %429, %430 : vector<8x128xf32>
    %cst_170 = arith.constant 5.000000e-01 : f32
    %432 = vector.broadcast %cst_170 : f32 to vector<8x128xf32>
    %433 = arith.mulf %432, %431 : vector<8x128xf32>
    %434 = vector.shape_cast %20 : vector<1x128xi1> to vector<1x128xi1>
    %435 = vector.broadcast %434 : vector<1x128xi1> to vector<8x128xi1>
    %436 = arith.select %435, %433, %429 : vector<8x128xi1>, vector<8x128xf32>
    %437 = vector.extract_strided_slice %436 {offsets = [0, 0], sizes = [8, 32], strides = [1, 1]} : vector<8x128xf32> to vector<8x32xf32>
    %438 = vector.extract_strided_slice %436 {offsets = [0, 32], sizes = [8, 32], strides = [1, 1]} : vector<8x128xf32> to vector<8x32xf32>
    %439 = vector.extract_strided_slice %436 {offsets = [0, 64], sizes = [8, 32], strides = [1, 1]} : vector<8x128xf32> to vector<8x32xf32>
    %440 = vector.extract_strided_slice %436 {offsets = [0, 96], sizes = [8, 32], strides = [1, 1]} : vector<8x128xf32> to vector<8x32xf32>
    %441 = arith.mulf %438, %382 : vector<8x32xf32>
    %442 = arith.mulf %437, %440 : vector<8x32xf32>
    %443 = arith.addf %441, %442 : vector<8x32xf32>
    %444 = math.tanh %443 : vector<8x32xf32>
    %445 = arith.mulf %439, %444 : vector<8x32xf32>
    %446 = arith.index_cast %c6_i32 : i32 to index
    %c0_171 = arith.constant 0 : index
    %c0_172 = arith.constant 0 : index
    %447 = vector.load %arg9[%446, %c0_171, %c0_172] : memref<8x8x32xf32, #tpu.memory_space<vmem>>, vector<1x8x32xf32>
    %448 = vector.shape_cast %447 : vector<1x8x32xf32> to vector<8x32xf32>
    %449 = vector.shape_cast %445 : vector<8x32xf32> to vector<1x8x32xf32>
    tpu.vector_store %arg9[%446, %c0_171, %c0_172], %449 {strides = array<i32>} : memref<8x8x32xf32, #tpu.memory_space<vmem>>, vector<1x8x32xf32>,
    %c8_i32_173 = arith.constant 8 : i32
    %450 = arith.muli %arg1, %c8_i32_173 : i32
    %451 = arith.addi %450, %c6_i32 : i32
    %c7_i32_174 = arith.constant 7 : i32
    %452 = arith.cmpi eq, %451, %c7_i32_174 : i32
    %453 = arith.extui %452 : i1 to i32
    %c0_i32_175 = arith.constant 0 : i32
    %454 = arith.cmpi ne, %453, %c0_i32_175 : i32
    scf.if %454 {
      %c0_208 = arith.constant 0 : index
      %c0_209 = arith.constant 0 : index
      %520 = vector.load %arg10[%c0_208, %c0_209] : memref<8x32xf32, #tpu.memory_space<vmem>>, vector<8x32xf32>
      tpu.vector_store %arg10[%c0_208, %c0_209], %418 {strides = array<i32>} : memref<8x32xf32, #tpu.memory_space<vmem>>, vector<8x32xf32>,
      %c0_210 = arith.constant 0 : index
      %c0_211 = arith.constant 0 : index
      %521 = vector.load %arg11[%c0_210, %c0_211] : memref<8x32xf32, #tpu.memory_space<vmem>>, vector<8x32xf32>
      tpu.vector_store %arg11[%c0_210, %c0_211], %445 {strides = array<i32>} : memref<8x32xf32, #tpu.memory_space<vmem>>, vector<8x32xf32>,
    } else {
    }
    %c7_i32_176 = arith.constant 7 : i32
    %455 = arith.index_cast %c7_i32_176 : i32 to index
    %c0_177 = arith.constant 0 : index
    %c0_178 = arith.constant 0 : index
    %456 = vector.load %arg12[%455, %c0_177, %c0_178] : memref<8x8x128xf32, #tpu.memory_space<vmem>>, vector<1x8x128xf32>
    %457 = vector.shape_cast %456 : vector<1x8x128xf32> to vector<8x128xf32>
    %c0_179 = arith.constant 0 : index
    %c0_180 = arith.constant 0 : index
    %458 = vector.load %arg4[%c0_179, %c0_180] : memref<32x128xf32, #tpu.memory_space<vmem>>, vector<32x128xf32>
    %cst_181 = arith.constant dense<0.000000e+00> : vector<8x128xf32>
    %459 = tpu.matmul %418, %458, %cst_181 {dimension_numbers = #tpu.dot_dimension_numbers<[1], [0], [0], [1], [0, 0, 1, 1], [], []>} : vector<8x32xf32>, vector<32x128xf32>, vector<8x128xf32> -> vector<8x128xf32>
    %460 = arith.addf %457, %459 : vector<8x128xf32>
    %461 = vector.broadcast %17 : vector<1x128xf32> to vector<8x128xf32>
    %462 = arith.mulf %460, %461 : vector<8x128xf32>
    %463 = math.tanh %462 : vector<8x128xf32>
    %cst_182 = arith.constant 1.000000e+00 : f32
    %464 = vector.broadcast %cst_182 : f32 to vector<8x128xf32>
    %465 = arith.addf %463, %464 : vector<8x128xf32>
    %cst_183 = arith.constant 5.000000e-01 : f32
    %466 = vector.broadcast %cst_183 : f32 to vector<8x128xf32>
    %467 = arith.mulf %466, %465 : vector<8x128xf32>
    %468 = vector.shape_cast %14 : vector<1x128xi1> to vector<1x128xi1>
    %469 = vector.broadcast %468 : vector<1x128xi1> to vector<8x128xi1>
    %470 = arith.select %469, %467, %463 : vector<8x128xi1>, vector<8x128xf32>
    %471 = vector.extract_strided_slice %470 {offsets = [0, 0], sizes = [8, 32], strides = [1, 1]} : vector<8x128xf32> to vector<8x32xf32>
    %472 = vector.extract_strided_slice %470 {offsets = [0, 32], sizes = [8, 32], strides = [1, 1]} : vector<8x128xf32> to vector<8x32xf32>
    %473 = vector.extract_strided_slice %470 {offsets = [0, 64], sizes = [8, 32], strides = [1, 1]} : vector<8x128xf32> to vector<8x32xf32>
    %474 = vector.extract_strided_slice %470 {offsets = [0, 96], sizes = [8, 32], strides = [1, 1]} : vector<8x128xf32> to vector<8x32xf32>
    %475 = arith.mulf %472, %416 : vector<8x32xf32>
    %476 = arith.mulf %471, %474 : vector<8x32xf32>
    %477 = arith.addf %475, %476 : vector<8x32xf32>
    %478 = math.tanh %477 : vector<8x32xf32>
    %479 = arith.mulf %473, %478 : vector<8x32xf32>
    %c0_184 = arith.constant 0 : index
    %c0_185 = arith.constant 0 : index
    %480 = vector.load %arg6[%c0_184, %c0_185] : memref<32x128xf32, #tpu.memory_space<vmem>>, vector<32x128xf32>
    %cst_186 = arith.constant dense<0.000000e+00> : vector<8x128xf32>
    %481 = tpu.matmul %479, %480, %cst_186 {dimension_numbers = #tpu.dot_dimension_numbers<[1], [0], [0], [1], [0, 0, 1, 1], [], []>} : vector<8x32xf32>, vector<32x128xf32>, vector<8x128xf32> -> vector<8x128xf32>
    %c0_187 = arith.constant 0 : index
    %c0_188 = arith.constant 0 : index
    %482 = vector.load %arg7[%c0_187, %c0_188] : memref<32x128xf32, #tpu.memory_space<vmem>>, vector<32x128xf32>
    %cst_189 = arith.constant dense<0.000000e+00> : vector<8x128xf32>
    %483 = tpu.matmul %445, %482, %cst_189 {dimension_numbers = #tpu.dot_dimension_numbers<[1], [0], [0], [1], [0, 0, 1, 1], [], []>} : vector<8x32xf32>, vector<32x128xf32>, vector<8x128xf32> -> vector<8x128xf32>
    %484 = arith.addf %481, %483 : vector<8x128xf32>
    %c0_190 = arith.constant 0 : index
    %c0_191 = arith.constant 0 : index
    %485 = vector.load %arg8[%c0_190, %c0_191] : memref<1x128xf32, #tpu.memory_space<vmem>>, vector<1x128xf32>
    %486 = vector.broadcast %485 : vector<1x128xf32> to vector<8x128xf32>
    %487 = arith.addf %484, %486 : vector<8x128xf32>
    %488 = vector.broadcast %23 : vector<1x128xf32> to vector<8x128xf32>
    %489 = arith.mulf %487, %488 : vector<8x128xf32>
    %490 = math.tanh %489 : vector<8x128xf32>
    %cst_192 = arith.constant 1.000000e+00 : f32
    %491 = vector.broadcast %cst_192 : f32 to vector<8x128xf32>
    %492 = arith.addf %490, %491 : vector<8x128xf32>
    %cst_193 = arith.constant 5.000000e-01 : f32
    %493 = vector.broadcast %cst_193 : f32 to vector<8x128xf32>
    %494 = arith.mulf %493, %492 : vector<8x128xf32>
    %495 = vector.shape_cast %20 : vector<1x128xi1> to vector<1x128xi1>
    %496 = vector.broadcast %495 : vector<1x128xi1> to vector<8x128xi1>
    %497 = arith.select %496, %494, %490 : vector<8x128xi1>, vector<8x128xf32>
    %498 = vector.extract_strided_slice %497 {offsets = [0, 0], sizes = [8, 32], strides = [1, 1]} : vector<8x128xf32> to vector<8x32xf32>
    %499 = vector.extract_strided_slice %497 {offsets = [0, 32], sizes = [8, 32], strides = [1, 1]} : vector<8x128xf32> to vector<8x32xf32>
    %500 = vector.extract_strided_slice %497 {offsets = [0, 64], sizes = [8, 32], strides = [1, 1]} : vector<8x128xf32> to vector<8x32xf32>
    %501 = vector.extract_strided_slice %497 {offsets = [0, 96], sizes = [8, 32], strides = [1, 1]} : vector<8x128xf32> to vector<8x32xf32>
    %502 = arith.mulf %499, %443 : vector<8x32xf32>
    %503 = arith.mulf %498, %501 : vector<8x32xf32>
    %504 = arith.addf %502, %503 : vector<8x32xf32>
    %505 = math.tanh %504 : vector<8x32xf32>
    %506 = arith.mulf %500, %505 : vector<8x32xf32>
    %507 = arith.index_cast %c7_i32_176 : i32 to index
    %c0_194 = arith.constant 0 : index
    %c0_195 = arith.constant 0 : index
    %508 = vector.load %arg9[%507, %c0_194, %c0_195] : memref<8x8x32xf32, #tpu.memory_space<vmem>>, vector<1x8x32xf32>
    %509 = vector.shape_cast %508 : vector<1x8x32xf32> to vector<8x32xf32>
    %510 = vector.shape_cast %506 : vector<8x32xf32> to vector<1x8x32xf32>
    tpu.vector_store %arg9[%507, %c0_194, %c0_195], %510 {strides = array<i32>} : memref<8x8x32xf32, #tpu.memory_space<vmem>>, vector<1x8x32xf32>,
    %c8_i32_196 = arith.constant 8 : i32
    %511 = arith.muli %arg1, %c8_i32_196 : i32
    %512 = arith.addi %511, %c7_i32_176 : i32
    %c7_i32_197 = arith.constant 7 : i32
    %513 = arith.cmpi eq, %512, %c7_i32_197 : i32
    %514 = arith.extui %513 : i1 to i32
    %c0_i32_198 = arith.constant 0 : i32
    %515 = arith.cmpi ne, %514, %c0_i32_198 : i32
    scf.if %515 {
      %c0_208 = arith.constant 0 : index
      %c0_209 = arith.constant 0 : index
      %520 = vector.load %arg10[%c0_208, %c0_209] : memref<8x32xf32, #tpu.memory_space<vmem>>, vector<8x32xf32>
      tpu.vector_store %arg10[%c0_208, %c0_209], %479 {strides = array<i32>} : memref<8x32xf32, #tpu.memory_space<vmem>>, vector<8x32xf32>,
      %c0_210 = arith.constant 0 : index
      %c0_211 = arith.constant 0 : index
      %521 = vector.load %arg11[%c0_210, %c0_211] : memref<8x32xf32, #tpu.memory_space<vmem>>, vector<8x32xf32>
      tpu.vector_store %arg11[%c0_210, %c0_211], %506 {strides = array<i32>} : memref<8x32xf32, #tpu.memory_space<vmem>>, vector<8x32xf32>,
    } else {
    }
    %c8_i32_199 = arith.constant 8 : i32
    %c0_200 = arith.constant 0 : index
    %c0_201 = arith.constant 0 : index
    %516 = vector.load %arg13[%c0_200, %c0_201] : memref<8x32xf32, #tpu.memory_space<vmem>>, vector<8x32xf32>
    tpu.vector_store %arg13[%c0_200, %c0_201], %479 {strides = array<i32>} : memref<8x32xf32, #tpu.memory_space<vmem>>, vector<8x32xf32>,
    %c0_202 = arith.constant 0 : index
    %c0_203 = arith.constant 0 : index
    %517 = vector.load %arg14[%c0_202, %c0_203] : memref<8x32xf32, #tpu.memory_space<vmem>>, vector<8x32xf32>
    tpu.vector_store %arg14[%c0_202, %c0_203], %477 {strides = array<i32>} : memref<8x32xf32, #tpu.memory_space<vmem>>, vector<8x32xf32>,
    %c0_204 = arith.constant 0 : index
    %c0_205 = arith.constant 0 : index
    %518 = vector.load %arg15[%c0_204, %c0_205] : memref<8x32xf32, #tpu.memory_space<vmem>>, vector<8x32xf32>
    tpu.vector_store %arg15[%c0_204, %c0_205], %506 {strides = array<i32>} : memref<8x32xf32, #tpu.memory_space<vmem>>, vector<8x32xf32>,
    %c0_206 = arith.constant 0 : index
    %c0_207 = arith.constant 0 : index
    %519 = vector.load %arg16[%c0_206, %c0_207] : memref<8x32xf32, #tpu.memory_space<vmem>>, vector<8x32xf32>
    tpu.vector_store %arg16[%c0_206, %c0_207], %504 {strides = array<i32>} : memref<8x32xf32, #tpu.memory_space<vmem>>, vector<8x32xf32>,
    return
  }
  func.func @transform_0(%arg0: i32, %arg1: i32) -> (i32, i32, i32) {
    %c0_i32 = arith.constant 0 : i32
    %c0_i32_0 = arith.constant 0 : i32
    return %arg1, %arg0, %c0_i32 : i32, i32, i32
  }
  func.func @transform_1(%arg0: i32, %arg1: i32) -> (i32, i32) {
    %c0_i32 = arith.constant 0 : i32
    %c0_i32_0 = arith.constant 0 : i32
    %c0_i32_1 = arith.constant 0 : i32
    return %c0_i32, %c0_i32_0 : i32, i32
  }
  func.func @transform_2(%arg0: i32, %arg1: i32) -> (i32, i32) {
    %c0_i32 = arith.constant 0 : i32
    %c0_i32_0 = arith.constant 0 : i32
    %c0_i32_1 = arith.constant 0 : i32
    return %c0_i32, %c0_i32_0 : i32, i32
  }
  func.func @transform_3(%arg0: i32, %arg1: i32) -> (i32, i32) {
    %c0_i32 = arith.constant 0 : i32
    %c0_i32_0 = arith.constant 0 : i32
    %c0_i32_1 = arith.constant 0 : i32
    return %c0_i32, %c0_i32_0 : i32, i32
  }
  func.func @transform_4(%arg0: i32, %arg1: i32) -> (i32, i32) {
    %c0_i32 = arith.constant 0 : i32
    %c0_i32_0 = arith.constant 0 : i32
    %c0_i32_1 = arith.constant 0 : i32
    return %c0_i32, %c0_i32_0 : i32, i32
  }
  func.func @transform_5(%arg0: i32, %arg1: i32) -> (i32, i32) {
    %c0_i32 = arith.constant 0 : i32
    %c0_i32_0 = arith.constant 0 : i32
    %c0_i32_1 = arith.constant 0 : i32
    return %c0_i32, %c0_i32_0 : i32, i32
  }
  func.func @transform_6(%arg0: i32, %arg1: i32) -> (i32, i32) {
    %c0_i32 = arith.constant 0 : i32
    %c0_i32_0 = arith.constant 0 : i32
    %c0_i32_1 = arith.constant 0 : i32
    return %c0_i32, %c0_i32_0 : i32, i32
  }
  func.func @transform_7(%arg0: i32, %arg1: i32) -> (i32, i32, i32) {
    %c0_i32 = arith.constant 0 : i32
    %c0_i32_0 = arith.constant 0 : i32
    return %arg1, %arg0, %c0_i32 : i32, i32, i32
  }
  func.func @transform_8(%arg0: i32, %arg1: i32) -> (i32, i32) {
    %c0_i32 = arith.constant 0 : i32
    %c0_i32_0 = arith.constant 0 : i32
    return %arg0, %c0_i32 : i32, i32
  }
  func.func @transform_9(%arg0: i32, %arg1: i32) -> (i32, i32) {
    %c0_i32 = arith.constant 0 : i32
    %c0_i32_0 = arith.constant 0 : i32
    return %arg0, %c0_i32 : i32, i32
  }
}

</mosaic_0001>

<llo_original>
// kernel: my_lstm_forward.1
$region0: #{my_lstm_forward.1}
  #allocation0 [shape = 'u32[]', space=smem, size = 0x4, offset = 0x4, fixed_abs, tag = 'smem constant byte address 0x4 - core index']
  #allocation1 [shape = 'u32[72,128]{1,0:T(1,128)}', space=vmem, size = 0x9000, scoped, tag = 'internal scratch']
  #allocation2 [shape = 'f32[8,8,128]{2,1,0:T(8,128)}', space=vmem, size = 0x8000, scoped, tag = 'scratch operand']
  #allocation3 [shape = 'f32[8,32]{1,0:T(8,128)}', space=vmem, size = 0x1000, scoped, tag = 'scratch operand']
  #allocation4 [shape = 'f32[8,32]{1,0:T(8,128)}', space=vmem, size = 0x1000, scoped, tag = 'scratch operand']
  #allocation5 [shape = 'f32[8,32]{1,0:T(8,128)}', space=vmem, size = 0x1000, scoped, tag = 'scratch operand']
  #allocation6 [shape = 'f32[8,32]{1,0:T(8,128)}', space=vmem, size = 0x1000, scoped, tag = 'scratch operand']
  %s0 = inlined_call_operand.vmem [shape: f32[8,8,16], index: 0, kind: input, shape index: {}]
  %s1 = inlined_call_operand.vmem [shape: f32[16,128], index: 1, kind: input, shape index: {}]
  %s2 = inlined_call_operand.vmem [shape: f32[32,128], index: 2, kind: input, shape index: {}]
  %s3 = inlined_call_operand.vmem [shape: f32[1,128], index: 3, kind: input, shape index: {}]
  %s4 = inlined_call_operand.vmem [shape: f32[32,128], index: 4, kind: input, shape index: {}]
  %s5 = inlined_call_operand.vmem [shape: f32[32,128], index: 5, kind: input, shape index: {}]
  %s6 = inlined_call_operand.vmem [shape: f32[1,128], index: 6, kind: input, shape index: {}]
  %s7 = inlined_call_operand.vmem [shape: f32[8,8,32], index: 7, kind: output, shape index: {0}]
  %s8 = inlined_call_operand.vmem [shape: f32[8,32], index: 8, kind: output, shape index: {1}]
  %s9 = inlined_call_operand.vmem [shape: f32[8,32], index: 9, kind: output, shape index: {2}]
  %10 = xla_tuple %s7, %s8, %s9
  %s11 = sld [smem:[#allocation0]]
  $region90: #{my_lstm_forward.1} parent=0
    _
  %s13 = ssub.s32 1, %s11
  %s14 = scalar_select 0, %s13, %s11
  // Predicated region
  $region2: #{my_lstm_forward.1} parent=0 // pred_check
    _
  $region3: #{my_lstm_forward.1} parent=0 // pred_check_branch
    %16 = sbr.rel (0) target = $region5
  $region4: #{my_lstm_forward.1} parent=0 // pred_region
    _
  $region5: #{my_lstm_forward.1} parent=0 // pred_fallthru
    _
  // Predicated region
  $region6: #{my_lstm_forward.1} parent=0 // pred_check
    _
  $region7: #{my_lstm_forward.1} parent=0 // pred_check_branch
    %18 = sbr.rel (0) target = $region9
  $region8: #{my_lstm_forward.1} parent=0 // pred_region
    _
  $region9: #{my_lstm_forward.1} parent=0 // pred_fallthru
    _
  // Predicated region
  $region10: #{my_lstm_forward.1} parent=0 // pred_check
    _
  $region11: #{my_lstm_forward.1} parent=0 // pred_check_branch
    %20 = sbr.rel (0) target = $region13
  $region12: #{my_lstm_forward.1} parent=0 // pred_region
    _
  $region13: #{my_lstm_forward.1} parent=0 // pred_fallthru
    _
  // Predicated region
  $region14: #{my_lstm_forward.1} parent=0 // pred_check
    _
  $region15: #{my_lstm_forward.1} parent=0 // pred_check_branch
    %22 = sbr.rel (0) target = $region17
  $region16: #{my_lstm_forward.1} parent=0 // pred_region
    _
  $region17: #{my_lstm_forward.1} parent=0 // pred_fallthru
    _
  // Predicated region
  $region18: #{my_lstm_forward.1} parent=0 // pred_check
    _
  $region19: #{my_lstm_forward.1} parent=0 // pred_check_branch
    %24 = sbr.rel (0) target = $region21
  $region20: #{my_lstm_forward.1} parent=0 // pred_region
    _
  $region21: #{my_lstm_forward.1} parent=0 // pred_fallthru
    _
  // Predicated region
  $region22: #{my_lstm_forward.1} parent=0 // pred_check
    _
  $region23: #{my_lstm_forward.1} parent=0 // pred_check_branch
    %26 = sbr.rel (0) target = $region25
  $region24: #{my_lstm_forward.1} parent=0 // pred_region
    _
  $region25: #{my_lstm_forward.1} parent=0 // pred_fallthru
    _
  // Predicated region
  $region26: #{my_lstm_forward.1} parent=0 // pred_check
    _
  $region27: #{my_lstm_forward.1} parent=0 // pred_check_branch
    %28 = sbr.rel (0) target = $region29
  $region28: #{my_lstm_forward.1} parent=0 // pred_region
    _
  $region29: #{my_lstm_forward.1} parent=0 // pred_fallthru
    _
  %p29 = scmp.eq.s32.totalorder 0, 0
  // Predicated region
  $region30: #{my_lstm_forward.1} parent=0 // pred_check
    %p30 = pneg %p29
  $region31: #{my_lstm_forward.1} parent=0 // pred_check_branch
    %32 = sbr.rel (%p30) target = $region33
  $region32: #{my_lstm_forward.1} parent=0 // pred_region
    %vm33 = vcmask 261120
    %34 = vst.msk [vmem:[#allocation3] sm:$0xff] %vm33, 0.0
    %35 = vst.msk [vmem:[#allocation4] sm:$0xff] %vm33, 0.0
    %36 = vst.msk [vmem:[#allocation5] sm:$0xff] %vm33, 0.0
    %37 = vst.msk [vmem:[#allocation6] sm:$0xff] %vm33, 0.0
  $region33: #{my_lstm_forward.1} parent=0 // pred_fallthru
    _
  %v38 = vld [vmem:[%s0] sm:$0xff]
  %v39 = vld [vmem:[%s0 + $0x8] sm:$0xff]
  %v40 = vld [vmem:[%s0 + $0x10] sm:$0xff]
  %v41 = vld [vmem:[%s0 + $0x18] sm:$0xff]
  %v42 = vld [vmem:[%s0 + $0x20] sm:$0xff]
  %v43 = vld [vmem:[%s0 + $0x28] sm:$0xff]
  %v44 = vld [vmem:[%s0 + $0x30] sm:$0xff]
  %v45 = vld [vmem:[%s0 + $0x38] sm:$0xff]
  %v46 = vld [vmem:[%s1] sm:$0xff]
  %v47 = vld [vmem:[%s1 + $0x8] sm:$0xff]
  %v48 = vld [vmem:[%s3] sm:$0x1]
  %v50 = vperm.slane %v48, 0
  %vm52 = vcmask 130048
  %v54 = vsel %vm52, %v38, 0
  %v57 = vsel %vm52, %v39, 0
  %v60 = vsel %vm52, %v40, 0
  %v63 = vsel %vm52, %v41, 0
  %v66 = vsel %vm52, %v42, 0
  %v69 = vsel %vm52, %v43, 0
  %v72 = vsel %vm52, %v44, 0
  %v75 = vsel %vm52, %v45, 0
  %77 = vmatpush.msra.mxu0 0.0
  %78 = vmatpush.msra.mxu0 0.0
  %79 = vmatpush.msra.mxu0 0.0
  %80 = vmatpush.msra.mxu0 0.0
  %81 = vmatpush.msra.mxu0 0.0
  %82 = vmatpush.msra.mxu0 0.0
  %83 = vmatpush.msra.mxu0 0.0
  %84 = vmatpush.msra.mxu0 0.0
  %85 = vmatpush.msra.mxu0 0.0
  %86 = vmatpush.msra.mxu0 0.0
  %87 = vmatpush.msra.mxu0 0.0
  %88 = vmatpush.msra.mxu0 0.0
  %89 = vmatpush.msra.mxu0 0.0
  %90 = vmatpush.msra.mxu0 0.0
  %91 = vmatpush.msra.mxu0 %v47
  %92 = vmatpush.msra.mxu0 %v46
  %93 = vmatmul.f32.gmra.mxu0 %v54
  %v94 = vpop.f32.mrf.mxu0
  %v95 = vadd.f32 %v50, %v94
  %96 = vmatmul.f32.gmra.mxu0 %v57
  %v97 = vpop.f32.mrf.mxu0
  %v98 = vadd.f32 %v50, %v97
  %99 = vmatmul.f32.gmra.mxu0 %v60
  %v100 = vpop.f32.mrf.mxu0
  %v101 = vadd.f32 %v50, %v100
  %102 = vmatmul.f32.gmra.mxu0 %v63
  %v103 = vpop.f32.mrf.mxu0
  %v104 = vadd.f32 %v50, %v103
  %105 = vmatmul.f32.gmra.mxu0 %v66
  %v106 = vpop.f32.mrf.mxu0
  %v107 = vadd.f32 %v50, %v106
  %108 = vmatmul.f32.gmra.mxu0 %v69
  %v109 = vpop.f32.mrf.mxu0
  %v110 = vadd.f32 %v50, %v109
  %111 = vmatmul.f32.gmra.mxu0 %v72
  %v112 = vpop.f32.mrf.mxu0
  %v113 = vadd.f32 %v50, %v112
  %114 = vmatmul.f32.gmra.mxu0 %v75
  %v115 = vpop.f32.mrf.mxu0
  %v116 = vadd.f32 %v50, %v115
  %117 = vdwg.mxu0
  %118 = vst [vmem:[#allocation2] sm:$0xff] %v95
  %119 = vst [vmem:[#allocation2 + $0x8] sm:$0xff] %v98
  %120 = vst [vmem:[#allocation2 + $0x10] sm:$0xff] %v101
  %121 = vst [vmem:[#allocation2 + $0x18] sm:$0xff] %v104
  %122 = vst [vmem:[#allocation2 + $0x20] sm:$0xff] %v107
  %123 = vst [vmem:[#allocation2 + $0x28] sm:$0xff] %v110
  %124 = vst [vmem:[#allocation2 + $0x30] sm:$0xff] %v113
  %125 = vst [vmem:[#allocation2 + $0x38] sm:$0xff] %v116
  %v126 = vlaneseq
  %v127 = vand.u32 %v126, 127
  %vm128 = vcmp.lt.s32.totalorder %v127, 96
  %v129 = vsel %vm128, 0.5, 1.0
  %v130 = vld [vmem:[#allocation3] sm:$0xff]
  %v131 = vld [vmem:[#allocation4] sm:$0xff]
  %v132 = vld [vmem:[#allocation5] sm:$0xff]
  %v133 = vld [vmem:[#allocation6] sm:$0xff]
  %v134 = vld [vmem:[#allocation2] sm:$0xff]
  %v135 = vld [vmem:[%s2] sm:$0xff]
  %v136 = vld [vmem:[%s2 + $0x8] sm:$0xff]
  %v137 = vld [vmem:[%s2 + $0x10] sm:$0xff]
  %v138 = vld [vmem:[%s2 + $0x18] sm:$0xff]
  %vm139 = vcmask 261120
  %v141 = vsel %vm139, %v130, 0
  %143 = vmatpush.msra.mxu0 0.0
  %144 = vmatpush.msra.mxu0 0.0
  %145 = vmatpush.msra.mxu0 0.0
  %146 = vmatpush.msra.mxu0 0.0
  %147 = vmatpush.msra.mxu0 0.0
  %148 = vmatpush.msra.mxu0 0.0
  %149 = vmatpush.msra.mxu0 0.0
  %150 = vmatpush.msra.mxu0 0.0
  %151 = vmatpush.msra.mxu0 0.0
  %152 = vmatpush.msra.mxu0 0.0
  %153 = vmatpush.msra.mxu0 0.0
  %154 = vmatpush.msra.mxu0 0.0
  %155 = vmatpush.msra.mxu0 %v138
  %156 = vmatpush.msra.mxu0 %v137
  %157 = vmatpush.msra.mxu0 %v136
  %158 = vmatpush.msra.mxu0 %v135
  %159 = vmatmul.f32.gmra.mxu0 %v141
  %v160 = vpop.f32.mrf.mxu0
  %v161 = vadd.f32 0.0, %v160
  %162 = vdwg.mxu0
  %v163 = vadd.f32 %v134, %v161
  %v164 = vmul.f32 %v163, %v129
  %v165 = vtanh.pop %v164
  %v166 = vadd.f32 %v165, 1.0
  %v167 = vmul.f32 %v166, 0.5
  %v168 = vsel %vm128, 1, 0
  %vm169 = vcmp.eq.s32.totalorder %v168, 1
  %v170 = vsel %vm169, %v167, %v165
  %172 = vrot.lane.b32.xlu0 %v131, 32
  %v173 = vpop.permute.xlu0 %172
  %v175 = vmul.f32 %v170, %v173
  %177 = vrot.lane.b32.xlu0 %v170, 32
  %v178 = vpop.permute.xlu0 %177
  %v180 = vmul.f32 %v170, %v178
  %182 = vrot.lane.b32.xlu0 %v180, 32
  %v183 = vpop.permute.xlu0 %182
  %v185 = vadd.f32 %v175, %v183
  %v186 = vtanh.pop %v185
  %188 = vrot.lane.b32.xlu0 %v186, 32
  %v189 = vpop.permute.xlu0 %188
  %v191 = vmul.f32 %v170, %v189
  %v192 = vld [vmem:[%s4] sm:$0xff]
  %v193 = vld [vmem:[%s4 + $0x8] sm:$0xff]
  %v194 = vld [vmem:[%s4 + $0x10] sm:$0xff]
  %v195 = vld [vmem:[%s4 + $0x18] sm:$0xff]
  %v196 = vld [vmem:[%s5] sm:$0xff]
  %v197 = vld [vmem:[%s5 + $0x8] sm:$0xff]
  %v198 = vld [vmem:[%s5 + $0x10] sm:$0xff]
  %v199 = vld [vmem:[%s5 + $0x18] sm:$0xff]
  %v201 = vsel %vm139, %v132, 0
  %203 = vmatpush.msra.mxu0 0.0
  %204 = vmatpush.msra.mxu0 0.0
  %205 = vmatpush.msra.mxu0 0.0
  %206 = vmatpush.msra.mxu0 0.0
  %207 = vmatpush.msra.mxu0 0.0
  %208 = vmatpush.msra.mxu0 0.0
  %209 = vmatpush.msra.mxu0 0.0
  %210 = vmatpush.msra.mxu0 0.0
  %211 = vmatpush.msra.mxu0 0.0
  %212 = vmatpush.msra.mxu0 0.0
  %213 = vmatpush.msra.mxu0 0.0
  %214 = vmatpush.msra.mxu0 0.0
  %215 = vmatpush.msra.mxu0 %v199
  %216 = vmatpush.msra.mxu0 %v198
  %217 = vmatpush.msra.mxu0 %v197
  %218 = vmatpush.msra.mxu0 %v196
  %219 = vmatmul.f32.gmra.mxu0 %v201
  %v220 = vpop.f32.mrf.mxu0
  %v221 = vadd.f32 0.0, %v220
  %222 = vdwg.mxu0
  %224 = vrot.lane.b32.xlu0 %v191, 64
  %v225 = vpop.permute.xlu0 %224
  %v226 = vsel %vm139, %v225, 0
  %228 = vmatpush.msra.mxu0 0.0
  %229 = vmatpush.msra.mxu0 0.0
  %230 = vmatpush.msra.mxu0 0.0
  %231 = vmatpush.msra.mxu0 0.0
  %232 = vmatpush.msra.mxu0 0.0
  %233 = vmatpush.msra.mxu0 0.0
  %234 = vmatpush.msra.mxu0 0.0
  %235 = vmatpush.msra.mxu0 0.0
  %236 = vmatpush.msra.mxu0 0.0
  %237 = vmatpush.msra.mxu0 0.0
  %238 = vmatpush.msra.mxu0 0.0
  %239 = vmatpush.msra.mxu0 0.0
  %240 = vmatpush.msra.mxu0 %v195
  %241 = vmatpush.msra.mxu0 %v194
  %242 = vmatpush.msra.mxu0 %v193
  %243 = vmatpush.msra.mxu0 %v192
  %244 = vmatmul.f32.gmra.mxu0 %v226
  %v245 = vpop.f32.mrf.mxu0
  %v246 = vadd.f32 %v221, %v245
  %247 = vdwg.mxu0
  %v248 = vld [vmem:[%s6] sm:$0x1]
  %v250 = vperm.slane %v248, 0
  %v252 = vadd.f32 %v246, %v250
  %v253 = vmul.f32 %v252, %v129
  %v254 = vtanh.pop %v253
  %v255 = vadd.f32 %v254, 1.0
  %v256 = vmul.f32 %v255, 0.5
  %v257 = vsel %vm169, %v256, %v254
  %259 = vrot.lane.b32.xlu0 %v133, 32
  %v260 = vpop.permute.xlu0 %259
  %v262 = vmul.f32 %v257, %v260
  %264 = vrot.lane.b32.xlu0 %v257, 32
  %v265 = vpop.permute.xlu0 %264
  %v267 = vmul.f32 %v257, %v265
  %269 = vrot.lane.b32.xlu0 %v267, 32
  %v270 = vpop.permute.xlu0 %269
  %v272 = vadd.f32 %v262, %v270
  %v273 = vtanh.pop %v272
  %275 = vrot.lane.b32.xlu0 %v273, 32
  %v276 = vpop.permute.xlu0 %275
  %v278 = vmul.f32 %v257, %v276
  %280 = vrot.lane.b32.xlu0 %v278, 64
  %v281 = vpop.permute.xlu0 %280
  %283 = vst.msk [vmem:[%s7] sm:$0xff] %vm139, %v281
  %s284 = smul.u32 0, 8
  %p285 = scmp.eq.s32.totalorder %s284, 7
  // Predicated region
  $region34: #{my_lstm_forward.1} parent=0 // pred_check
    %p286 = pneg %p285
  $region35: #{my_lstm_forward.1} parent=0 // pred_check_branch
    %288 = sbr.rel (%p286) target = $region37
  $region36: #{my_lstm_forward.1} parent=0 // pred_region
    %290 = vst.msk [vmem:[%s8] sm:$0xff] %vm139, %v225
    %291 = vst.msk [vmem:[%s9] sm:$0xff] %vm139, %v281
  $region37: #{my_lstm_forward.1} parent=0 // pred_fallthru
    _
  %s292 = scalar_lea.vmem [#allocation2], 8
  %v293 = vld [vmem:[%s292] sm:$0xff]
  %v294 = vld [vmem:[%s2] sm:$0xff]
  %v295 = vld [vmem:[%s2 + $0x8] sm:$0xff]
  %v296 = vld [vmem:[%s2 + $0x10] sm:$0xff]
  %v297 = vld [vmem:[%s2 + $0x18] sm:$0xff]
  %298 = vmatpush.msra.mxu0 0.0
  %299 = vmatpush.msra.mxu0 0.0
  %300 = vmatpush.msra.mxu0 0.0
  %301 = vmatpush.msra.mxu0 0.0
  %302 = vmatpush.msra.mxu0 0.0
  %303 = vmatpush.msra.mxu0 0.0
  %304 = vmatpush.msra.mxu0 0.0
  %305 = vmatpush.msra.mxu0 0.0
  %306 = vmatpush.msra.mxu0 0.0
  %307 = vmatpush.msra.mxu0 0.0
  %308 = vmatpush.msra.mxu0 0.0
  %309 = vmatpush.msra.mxu0 0.0
  %310 = vmatpush.msra.mxu0 %v297
  %311 = vmatpush.msra.mxu0 %v296
  %312 = vmatpush.msra.mxu0 %v295
  %313 = vmatpush.msra.mxu0 %v294
  %314 = vmatmul.f32.gmra.mxu0 %v226
  %v315 = vpop.f32.mrf.mxu0
  %v316 = vadd.f32 0.0, %v315
  %317 = vdwg.mxu0
  %v318 = vadd.f32 %v293, %v316
  %v319 = vmul.f32 %v318, %v129
  %v320 = vtanh.pop %v319
  %v321 = vadd.f32 %v320, 1.0
  %v322 = vmul.f32 %v321, 0.5
  %v323 = vsel %vm169, %v322, %v320
  %v324 = vmul.f32 %v323, %v185
  %326 = vrot.lane.b32.xlu0 %v323, 32
  %v327 = vpop.permute.xlu0 %326
  %v329 = vmul.f32 %v323, %v327
  %331 = vrot.lane.b32.xlu0 %v329, 32
  %v332 = vpop.permute.xlu0 %331
  %v334 = vadd.f32 %v324, %v332
  %v335 = vtanh.pop %v334
  %337 = vrot.lane.b32.xlu0 %v335, 32
  %v338 = vpop.permute.xlu0 %337
  %v340 = vmul.f32 %v323, %v338
  %v341 = vld [vmem:[%s4] sm:$0xff]
  %v342 = vld [vmem:[%s4 + $0x8] sm:$0xff]
  %v343 = vld [vmem:[%s4 + $0x10] sm:$0xff]
  %v344 = vld [vmem:[%s4 + $0x18] sm:$0xff]
  %v345 = vld [vmem:[%s5] sm:$0xff]
  %v346 = vld [vmem:[%s5 + $0x8] sm:$0xff]
  %v347 = vld [vmem:[%s5 + $0x10] sm:$0xff]
  %v348 = vld [vmem:[%s5 + $0x18] sm:$0xff]
  %v349 = vsel %vm139, %v281, 0
  %351 = vmatpush.msra.mxu0 0.0
  %352 = vmatpush.msra.mxu0 0.0
  %353 = vmatpush.msra.mxu0 0.0
  %354 = vmatpush.msra.mxu0 0.0
  %355 = vmatpush.msra.mxu0 0.0
  %356 = vmatpush.msra.mxu0 0.0
  %357 = vmatpush.msra.mxu0 0.0
  %358 = vmatpush.msra.mxu0 0.0
  %359 = vmatpush.msra.mxu0 0.0
  %360 = vmatpush.msra.mxu0 0.0
  %361 = vmatpush.msra.mxu0 0.0
  %362 = vmatpush.msra.mxu0 0.0
  %363 = vmatpush.msra.mxu0 %v348
  %364 = vmatpush.msra.mxu0 %v347
  %365 = vmatpush.msra.mxu0 %v346
  %366 = vmatpush.msra.mxu0 %v345
  %367 = vmatmul.f32.gmra.mxu0 %v349
  %v368 = vpop.f32.mrf.mxu0
  %v369 = vadd.f32 0.0, %v368
  %370 = vdwg.mxu0
  %372 = vrot.lane.b32.xlu0 %v340, 64
  %v373 = vpop.permute.xlu0 %372
  %v374 = vsel %vm139, %v373, 0
  %376 = vmatpush.msra.mxu0 0.0
  %377 = vmatpush.msra.mxu0 0.0
  %378 = vmatpush.msra.mxu0 0.0
  %379 = vmatpush.msra.mxu0 0.0
  %380 = vmatpush.msra.mxu0 0.0
  %381 = vmatpush.msra.mxu0 0.0
  %382 = vmatpush.msra.mxu0 0.0
  %383 = vmatpush.msra.mxu0 0.0
  %384 = vmatpush.msra.mxu0 0.0
  %385 = vmatpush.msra.mxu0 0.0
  %386 = vmatpush.msra.mxu0 0.0
  %387 = vmatpush.msra.mxu0 0.0
  %388 = vmatpush.msra.mxu0 %v344
  %389 = vmatpush.msra.mxu0 %v343
  %390 = vmatpush.msra.mxu0 %v342
  %391 = vmatpush.msra.mxu0 %v341
  %392 = vmatmul.f32.gmra.mxu0 %v374
  %v393 = vpop.f32.mrf.mxu0
  %v394 = vadd.f32 %v369, %v393
  %395 = vdwg.mxu0
  %v396 = vld [vmem:[%s6] sm:$0x1]
  %v398 = vperm.slane %v396, 0
  %v400 = vadd.f32 %v394, %v398
  %v401 = vmul.f32 %v400, %v129
  %v402 = vtanh.pop %v401
  %v403 = vadd.f32 %v402, 1.0
  %v404 = vmul.f32 %v403, 0.5
  %v405 = vsel %vm169, %v404, %v402
  %v406 = vmul.f32 %v405, %v272
  %408 = vrot.lane.b32.xlu0 %v405, 32
  %v409 = vpop.permute.xlu0 %408
  %v411 = vmul.f32 %v405, %v409
  %413 = vrot.lane.b32.xlu0 %v411, 32
  %v414 = vpop.permute.xlu0 %413
  %v416 = vadd.f32 %v406, %v414
  %v417 = vtanh.pop %v416
  %419 = vrot.lane.b32.xlu0 %v417, 32
  %v420 = vpop.permute.xlu0 %419
  %v422 = vmul.f32 %v405, %v420
  %424 = vrot.lane.b32.xlu0 %v422, 64
  %v425 = vpop.permute.xlu0 %424
  %s427 = scalar_lea.vmem %s7, 8
  %428 = vst.msk [vmem:[%s427] sm:$0xff] %vm139, %v425
  %s429 = sadd.s32 %s284, 1
  %p430 = scmp.eq.s32.totalorder %s429, 7
  // Predicated region
  $region38: #{my_lstm_forward.1} parent=0 // pred_check
    %p431 = pneg %p430
  $region39: #{my_lstm_forward.1} parent=0 // pred_check_branch
    %433 = sbr.rel (%p431) target = $region41
  $region40: #{my_lstm_forward.1} parent=0 // pred_region
    %435 = vst.msk [vmem:[%s8] sm:$0xff] %vm139, %v373
    %436 = vst.msk [vmem:[%s9] sm:$0xff] %vm139, %v425
  $region41: #{my_lstm_forward.1} parent=0 // pred_fallthru
    _
  %s437 = scalar_lea.vmem [#allocation2], 16
  %v438 = vld [vmem:[%s437] sm:$0xff]
  %v439 = vld [vmem:[%s2] sm:$0xff]
  %v440 = vld [vmem:[%s2 + $0x8] sm:$0xff]
  %v441 = vld [vmem:[%s2 + $0x10] sm:$0xff]
  %v442 = vld [vmem:[%s2 + $0x18] sm:$0xff]
  %443 = vmatpush.msra.mxu0 0.0
  %444 = vmatpush.msra.mxu0 0.0
  %445 = vmatpush.msra.mxu0 0.0
  %446 = vmatpush.msra.mxu0 0.0
  %447 = vmatpush.msra.mxu0 0.0
  %448 = vmatpush.msra.mxu0 0.0
  %449 = vmatpush.msra.mxu0 0.0
  %450 = vmatpush.msra.mxu0 0.0
  %451 = vmatpush.msra.mxu0 0.0
  %452 = vmatpush.msra.mxu0 0.0
  %453 = vmatpush.msra.mxu0 0.0
  %454 = vmatpush.msra.mxu0 0.0
  %455 = vmatpush.msra.mxu0 %v442
  %456 = vmatpush.msra.mxu0 %v441
  %457 = vmatpush.msra.mxu0 %v440
  %458 = vmatpush.msra.mxu0 %v439
  %459 = vmatmul.f32.gmra.mxu0 %v374
  %v460 = vpop.f32.mrf.mxu0
  %v461 = vadd.f32 0.0, %v460
  %462 = vdwg.mxu0
  %v463 = vadd.f32 %v438, %v461
  %v464 = vmul.f32 %v463, %v129
  %v465 = vtanh.pop %v464
  %v466 = vadd.f32 %v465, 1.0
  %v467 = vmul.f32 %v466, 0.5
  %v468 = vsel %vm169, %v467, %v465
  %v469 = vmul.f32 %v468, %v334
  %471 = vrot.lane.b32.xlu0 %v468, 32
  %v472 = vpop.permute.xlu0 %471
  %v474 = vmul.f32 %v468, %v472
  %476 = vrot.lane.b32.xlu0 %v474, 32
  %v477 = vpop.permute.xlu0 %476
  %v479 = vadd.f32 %v469, %v477
  %v480 = vtanh.pop %v479
  %482 = vrot.lane.b32.xlu0 %v480, 32
  %v483 = vpop.permute.xlu0 %482
  %v485 = vmul.f32 %v468, %v483
  %v486 = vld [vmem:[%s4] sm:$0xff]
  %v487 = vld [vmem:[%s4 + $0x8] sm:$0xff]
  %v488 = vld [vmem:[%s4 + $0x10] sm:$0xff]
  %v489 = vld [vmem:[%s4 + $0x18] sm:$0xff]
  %v490 = vld [vmem:[%s5] sm:$0xff]
  %v491 = vld [vmem:[%s5 + $0x8] sm:$0xff]
  %v492 = vld [vmem:[%s5 + $0x10] sm:$0xff]
  %v493 = vld [vmem:[%s5 + $0x18] sm:$0xff]
  %v494 = vsel %vm139, %v425, 0
  %496 = vmatpush.msra.mxu0 0.0
  %497 = vmatpush.msra.mxu0 0.0
  %498 = vmatpush.msra.mxu0 0.0
  %499 = vmatpush.msra.mxu0 0.0
  %500 = vmatpush.msra.mxu0 0.0
  %501 = vmatpush.msra.mxu0 0.0
  %502 = vmatpush.msra.mxu0 0.0
  %503 = vmatpush.msra.mxu0 0.0
  %504 = vmatpush.msra.mxu0 0.0
  %505 = vmatpush.msra.mxu0 0.0
  %506 = vmatpush.msra.mxu0 0.0
  %507 = vmatpush.msra.mxu0 0.0
  %508 = vmatpush.msra.mxu0 %v493
  %509 = vmatpush.msra.mxu0 %v492
  %510 = vmatpush.msra.mxu0 %v491
  %511 = vmatpush.msra.mxu0 %v490
  %512 = vmatmul.f32.gmra.mxu0 %v494
  %v513 = vpop.f32.mrf.mxu0
  %v514 = vadd.f32 0.0, %v513
  %515 = vdwg.mxu0
  %517 = vrot.lane.b32.xlu0 %v485, 64
  %v518 = vpop.permute.xlu0 %517
  %v519 = vsel %vm139, %v518, 0
  %521 = vmatpush.msra.mxu0 0.0
  %522 = vmatpush.msra.mxu0 0.0
  %523 = vmatpush.msra.mxu0 0.0
  %524 = vmatpush.msra.mxu0 0.0
  %525 = vmatpush.msra.mxu0 0.0
  %526 = vmatpush.msra.mxu0 0.0
  %527 = vmatpush.msra.mxu0 0.0
  %528 = vmatpush.msra.mxu0 0.0
  %529 = vmatpush.msra.mxu0 0.0
  %530 = vmatpush.msra.mxu0 0.0
  %531 = vmatpush.msra.mxu0 0.0
  %532 = vmatpush.msra.mxu0 0.0
  %533 = vmatpush.msra.mxu0 %v489
  %534 = vmatpush.msra.mxu0 %v488
  %535 = vmatpush.msra.mxu0 %v487
  %536 = vmatpush.msra.mxu0 %v486
  %537 = vmatmul.f32.gmra.mxu0 %v519
  %v538 = vpop.f32.mrf.mxu0
  %v539 = vadd.f32 %v514, %v538
  %540 = vdwg.mxu0
  %v541 = vld [vmem:[%s6] sm:$0x1]
  %v543 = vperm.slane %v541, 0
  %v545 = vadd.f32 %v539, %v543
  %v546 = vmul.f32 %v545, %v129
  %v547 = vtanh.pop %v546
  %v548 = vadd.f32 %v547, 1.0
  %v549 = vmul.f32 %v548, 0.5
  %v550 = vsel %vm169, %v549, %v547
  %v551 = vmul.f32 %v550, %v416
  %553 = vrot.lane.b32.xlu0 %v550, 32
  %v554 = vpop.permute.xlu0 %553
  %v556 = vmul.f32 %v550, %v554
  %558 = vrot.lane.b32.xlu0 %v556, 32
  %v559 = vpop.permute.xlu0 %558
  %v561 = vadd.f32 %v551, %v559
  %v562 = vtanh.pop %v561
  %564 = vrot.lane.b32.xlu0 %v562, 32
  %v565 = vpop.permute.xlu0 %564
  %v567 = vmul.f32 %v550, %v565
  %569 = vrot.lane.b32.xlu0 %v567, 64
  %v570 = vpop.permute.xlu0 %569
  %s572 = scalar_lea.vmem %s7, 16
  %573 = vst.msk [vmem:[%s572] sm:$0xff] %vm139, %v570
  %s574 = sadd.s32 %s284, 2
  %p575 = scmp.eq.s32.totalorder %s574, 7
  // Predicated region
  $region42: #{my_lstm_forward.1} parent=0 // pred_check
    %p576 = pneg %p575
  $region43: #{my_lstm_forward.1} parent=0 // pred_check_branch
    %578 = sbr.rel (%p576) target = $region45
  $region44: #{my_lstm_forward.1} parent=0 // pred_region
    %580 = vst.msk [vmem:[%s8] sm:$0xff] %vm139, %v518
    %581 = vst.msk [vmem:[%s9] sm:$0xff] %vm139, %v570
  $region45: #{my_lstm_forward.1} parent=0 // pred_fallthru
    _
  %s582 = scalar_lea.vmem [#allocation2], 24
  %v583 = vld [vmem:[%s582] sm:$0xff]
  %v584 = vld [vmem:[%s2] sm:$0xff]
  %v585 = vld [vmem:[%s2 + $0x8] sm:$0xff]
  %v586 = vld [vmem:[%s2 + $0x10] sm:$0xff]
  %v587 = vld [vmem:[%s2 + $0x18] sm:$0xff]
  %588 = vmatpush.msra.mxu0 0.0
  %589 = vmatpush.msra.mxu0 0.0
  %590 = vmatpush.msra.mxu0 0.0
  %591 = vmatpush.msra.mxu0 0.0
  %592 = vmatpush.msra.mxu0 0.0
  %593 = vmatpush.msra.mxu0 0.0
  %594 = vmatpush.msra.mxu0 0.0
  %595 = vmatpush.msra.mxu0 0.0
  %596 = vmatpush.msra.mxu0 0.0
  %597 = vmatpush.msra.mxu0 0.0
  %598 = vmatpush.msra.mxu0 0.0
  %599 = vmatpush.msra.mxu0 0.0
  %600 = vmatpush.msra.mxu0 %v587
  %601 = vmatpush.msra.mxu0 %v586
  %602 = vmatpush.msra.mxu0 %v585
  %603 = vmatpush.msra.mxu0 %v584
  %604 = vmatmul.f32.gmra.mxu0 %v519
  %v605 = vpop.f32.mrf.mxu0
  %v606 = vadd.f32 0.0, %v605
  %607 = vdwg.mxu0
  %v608 = vadd.f32 %v583, %v606
  %v609 = vmul.f32 %v608, %v129
  %v610 = vtanh.pop %v609
  %v611 = vadd.f32 %v610, 1.0
  %v612 = vmul.f32 %v611, 0.5
  %v613 = vsel %vm169, %v612, %v610
  %v614 = vmul.f32 %v613, %v479
  %616 = vrot.lane.b32.xlu0 %v613, 32
  %v617 = vpop.permute.xlu0 %616
  %v619 = vmul.f32 %v613, %v617
  %621 = vrot.lane.b32.xlu0 %v619, 32
  %v622 = vpop.permute.xlu0 %621
  %v624 = vadd.f32 %v614, %v622
  %v625 = vtanh.pop %v624
  %627 = vrot.lane.b32.xlu0 %v625, 32
  %v628 = vpop.permute.xlu0 %627
  %v630 = vmul.f32 %v613, %v628
  %v631 = vld [vmem:[%s4] sm:$0xff]
  %v632 = vld [vmem:[%s4 + $0x8] sm:$0xff]
  %v633 = vld [vmem:[%s4 + $0x10] sm:$0xff]
  %v634 = vld [vmem:[%s4 + $0x18] sm:$0xff]
  %v635 = vld [vmem:[%s5] sm:$0xff]
  %v636 = vld [vmem:[%s5 + $0x8] sm:$0xff]
  %v637 = vld [vmem:[%s5 + $0x10] sm:$0xff]
  %v638 = vld [vmem:[%s5 + $0x18] sm:$0xff]
  %v639 = vsel %vm139, %v570, 0
  %641 = vmatpush.msra.mxu0 0.0
  %642 = vmatpush.msra.mxu0 0.0
  %643 = vmatpush.msra.mxu0 0.0
  %644 = vmatpush.msra.mxu0 0.0
  %645 = vmatpush.msra.mxu0 0.0
  %646 = vmatpush.msra.mxu0 0.0
  %647 = vmatpush.msra.mxu0 0.0
  %648 = vmatpush.msra.mxu0 0.0
  %649 = vmatpush.msra.mxu0 0.0
  %650 = vmatpush.msra.mxu0 0.0
  %651 = vmatpush.msra.mxu0 0.0
  %652 = vmatpush.msra.mxu0 0.0
  %653 = vmatpush.msra.mxu0 %v638
  %654 = vmatpush.msra.mxu0 %v637
  %655 = vmatpush.msra.mxu0 %v636
  %656 = vmatpush.msra.mxu0 %v635
  %657 = vmatmul.f32.gmra.mxu0 %v639
  %v658 = vpop.f32.mrf.mxu0
  %v659 = vadd.f32 0.0, %v658
  %660 = vdwg.mxu0
  %662 = vrot.lane.b32.xlu0 %v630, 64
  %v663 = vpop.permute.xlu0 %662
  %v664 = vsel %vm139, %v663, 0
  %666 = vmatpush.msra.mxu0 0.0
  %667 = vmatpush.msra.mxu0 0.0
  %668 = vmatpush.msra.mxu0 0.0
  %669 = vmatpush.msra.mxu0 0.0
  %670 = vmatpush.msra.mxu0 0.0
  %671 = vmatpush.msra.mxu0 0.0
  %672 = vmatpush.msra.mxu0 0.0
  %673 = vmatpush.msra.mxu0 0.0
  %674 = vmatpush.msra.mxu0 0.0
  %675 = vmatpush.msra.mxu0 0.0
  %676 = vmatpush.msra.mxu0 0.0
  %677 = vmatpush.msra.mxu0 0.0
  %678 = vmatpush.msra.mxu0 %v634
  %679 = vmatpush.msra.mxu0 %v633
  %680 = vmatpush.msra.mxu0 %v632
  %681 = vmatpush.msra.mxu0 %v631
  %682 = vmatmul.f32.gmra.mxu0 %v664
  %v683 = vpop.f32.mrf.mxu0
  %v684 = vadd.f32 %v659, %v683
  %685 = vdwg.mxu0
  %v686 = vld [vmem:[%s6] sm:$0x1]
  %v688 = vperm.slane %v686, 0
  %v690 = vadd.f32 %v684, %v688
  %v691 = vmul.f32 %v690, %v129
  %v692 = vtanh.pop %v691
  %v693 = vadd.f32 %v692, 1.0
  %v694 = vmul.f32 %v693, 0.5
  %v695 = vsel %vm169, %v694, %v692
  %v696 = vmul.f32 %v695, %v561
  %698 = vrot.lane.b32.xlu0 %v695, 32
  %v699 = vpop.permute.xlu0 %698
  %v701 = vmul.f32 %v695, %v699
  %703 = vrot.lane.b32.xlu0 %v701, 32
  %v704 = vpop.permute.xlu0 %703
  %v706 = vadd.f32 %v696, %v704
  %v707 = vtanh.pop %v706
  %709 = vrot.lane.b32.xlu0 %v707, 32
  %v710 = vpop.permute.xlu0 %709
  %v712 = vmul.f32 %v695, %v710
  %714 = vrot.lane.b32.xlu0 %v712, 64
  %v715 = vpop.permute.xlu0 %714
  %s717 = scalar_lea.vmem %s7, 24
  %718 = vst.msk [vmem:[%s717] sm:$0xff] %vm139, %v715
  %s719 = sadd.s32 %s284, 3
  %p720 = scmp.eq.s32.totalorder %s719, 7
  // Predicated region
  $region46: #{my_lstm_forward.1} parent=0 // pred_check
    %p721 = pneg %p720
  $region47: #{my_lstm_forward.1} parent=0 // pred_check_branch
    %723 = sbr.rel (%p721) target = $region49
  $region48: #{my_lstm_forward.1} parent=0 // pred_region
    %725 = vst.msk [vmem:[%s8] sm:$0xff] %vm139, %v663
    %726 = vst.msk [vmem:[%s9] sm:$0xff] %vm139, %v715
  $region49: #{my_lstm_forward.1} parent=0 // pred_fallthru
    _
  %s727 = scalar_lea.vmem [#allocation2], 32
  %v728 = vld [vmem:[%s727] sm:$0xff]
  %v729 = vld [vmem:[%s2] sm:$0xff]
  %v730 = vld [vmem:[%s2 + $0x8] sm:$0xff]
  %v731 = vld [vmem:[%s2 + $0x10] sm:$0xff]
  %v732 = vld [vmem:[%s2 + $0x18] sm:$0xff]
  %733 = vmatpush.msra.mxu0 0.0
  %734 = vmatpush.msra.mxu0 0.0
  %735 = vmatpush.msra.mxu0 0.0
  %736 = vmatpush.msra.mxu0 0.0
  %737 = vmatpush.msra.mxu0 0.0
  %738 = vmatpush.msra.mxu0 0.0
  %739 = vmatpush.msra.mxu0 0.0
  %740 = vmatpush.msra.mxu0 0.0
  %741 = vmatpush.msra.mxu0 0.0
  %742 = vmatpush.msra.mxu0 0.0
  %743 = vmatpush.msra.mxu0 0.0
  %744 = vmatpush.msra.mxu0 0.0
  %745 = vmatpush.msra.mxu0 %v732
  %746 = vmatpush.msra.mxu0 %v731
  %747 = vmatpush.msra.mxu0 %v730
  %748 = vmatpush.msra.mxu0 %v729
  %749 = vmatmul.f32.gmra.mxu0 %v664
  %v750 = vpop.f32.mrf.mxu0
  %v751 = vadd.f32 0.0, %v750
  %752 = vdwg.mxu0
  %v753 = vadd.f32 %v728, %v751
  %v754 = vmul.f32 %v753, %v129
  %v755 = vtanh.pop %v754
  %v756 = vadd.f32 %v755, 1.0
  %v757 = vmul.f32 %v756, 0.5
  %v758 = vsel %vm169, %v757, %v755
  %v759 = vmul.f32 %v758, %v624
  %761 = vrot.lane.b32.xlu0 %v758, 32
  %v762 = vpop.permute.xlu0 %761
  %v764 = vmul.f32 %v758, %v762
  %766 = vrot.lane.b32.xlu0 %v764, 32
  %v767 = vpop.permute.xlu0 %766
  %v769 = vadd.f32 %v759, %v767
  %v770 = vtanh.pop %v769
  %772 = vrot.lane.b32.xlu0 %v770, 32
  %v773 = vpop.permute.xlu0 %772
  %v775 = vmul.f32 %v758, %v773
  %v776 = vld [vmem:[%s4] sm:$0xff]
  %v777 = vld [vmem:[%s4 + $0x8] sm:$0xff]
  %v778 = vld [vmem:[%s4 + $0x10] sm:$0xff]
  %v779 = vld [vmem:[%s4 + $0x18] sm:$0xff]
  %v780 = vld [vmem:[%s5] sm:$0xff]
  %v781 = vld [vmem:[%s5 + $0x8] sm:$0xff]
  %v782 = vld [vmem:[%s5 + $0x10] sm:$0xff]
  %v783 = vld [vmem:[%s5 + $0x18] sm:$0xff]
  %v784 = vsel %vm139, %v715, 0
  %786 = vmatpush.msra.mxu0 0.0
  %787 = vmatpush.msra.mxu0 0.0
  %788 = vmatpush.msra.mxu0 0.0
  %789 = vmatpush.msra.mxu0 0.0
  %790 = vmatpush.msra.mxu0 0.0
  %791 = vmatpush.msra.mxu0 0.0
  %792 = vmatpush.msra.mxu0 0.0
  %793 = vmatpush.msra.mxu0 0.0
  %794 = vmatpush.msra.mxu0 0.0
  %795 = vmatpush.msra.mxu0 0.0
  %796 = vmatpush.msra.mxu0 0.0
  %797 = vmatpush.msra.mxu0 0.0
  %798 = vmatpush.msra.mxu0 %v783
  %799 = vmatpush.msra.mxu0 %v782
  %800 = vmatpush.msra.mxu0 %v781
  %801 = vmatpush.msra.mxu0 %v780
  %802 = vmatmul.f32.gmra.mxu0 %v784
  %v803 = vpop.f32.mrf.mxu0
  %v804 = vadd.f32 0.0, %v803
  %805 = vdwg.mxu0
  %807 = vrot.lane.b32.xlu0 %v775, 64
  %v808 = vpop.permute.xlu0 %807
  %v809 = vsel %vm139, %v808, 0
  %811 = vmatpush.msra.mxu0 0.0
  %812 = vmatpush.msra.mxu0 0.0
  %813 = vmatpush.msra.mxu0 0.0
  %814 = vmatpush.msra.mxu0 0.0
  %815 = vmatpush.msra.mxu0 0.0
  %816 = vmatpush.msra.mxu0 0.0
  %817 = vmatpush.msra.mxu0 0.0
  %818 = vmatpush.msra.mxu0 0.0
  %819 = vmatpush.msra.mxu0 0.0
  %820 = vmatpush.msra.mxu0 0.0
  %821 = vmatpush.msra.mxu0 0.0
  %822 = vmatpush.msra.mxu0 0.0
  %823 = vmatpush.msra.mxu0 %v779
  %824 = vmatpush.msra.mxu0 %v778
  %825 = vmatpush.msra.mxu0 %v777
  %826 = vmatpush.msra.mxu0 %v776
  %827 = vmatmul.f32.gmra.mxu0 %v809
  %v828 = vpop.f32.mrf.mxu0
  %v829 = vadd.f32 %v804, %v828
  %830 = vdwg.mxu0
  %v831 = vld [vmem:[%s6] sm:$0x1]
  %v833 = vperm.slane %v831, 0
  %v835 = vadd.f32 %v829, %v833
  %v836 = vmul.f32 %v835, %v129
  %v837 = vtanh.pop %v836
  %v838 = vadd.f32 %v837, 1.0
  %v839 = vmul.f32 %v838, 0.5
  %v840 = vsel %vm169, %v839, %v837
  %v841 = vmul.f32 %v840, %v706
  %843 = vrot.lane.b32.xlu0 %v840, 32
  %v844 = vpop.permute.xlu0 %843
  %v846 = vmul.f32 %v840, %v844
  %848 = vrot.lane.b32.xlu0 %v846, 32
  %v849 = vpop.permute.xlu0 %848
  %v851 = vadd.f32 %v841, %v849
  %v852 = vtanh.pop %v851
  %854 = vrot.lane.b32.xlu0 %v852, 32
  %v855 = vpop.permute.xlu0 %854
  %v857 = vmul.f32 %v840, %v855
  %859 = vrot.lane.b32.xlu0 %v857, 64
  %v860 = vpop.permute.xlu0 %859
  %s862 = scalar_lea.vmem %s7, 32
  %863 = vst.msk [vmem:[%s862] sm:$0xff] %vm139, %v860
  %s864 = sadd.s32 %s284, 4
  %p865 = scmp.eq.s32.totalorder %s864, 7
  // Predicated region
  $region50: #{my_lstm_forward.1} parent=0 // pred_check
    %p866 = pneg %p865
  $region51: #{my_lstm_forward.1} parent=0 // pred_check_branch
    %868 = sbr.rel (%p866) target = $region53
  $region52: #{my_lstm_forward.1} parent=0 // pred_region
    %870 = vst.msk [vmem:[%s8] sm:$0xff] %vm139, %v808
    %871 = vst.msk [vmem:[%s9] sm:$0xff] %vm139, %v860
  $region53: #{my_lstm_forward.1} parent=0 // pred_fallthru
    _
  %s872 = scalar_lea.vmem [#allocation2], 40
  %v873 = vld [vmem:[%s872] sm:$0xff]
  %v874 = vld [vmem:[%s2] sm:$0xff]
  %v875 = vld [vmem:[%s2 + $0x8] sm:$0xff]
  %v876 = vld [vmem:[%s2 + $0x10] sm:$0xff]
  %v877 = vld [vmem:[%s2 + $0x18] sm:$0xff]
  %878 = vmatpush.msra.mxu0 0.0
  %879 = vmatpush.msra.mxu0 0.0
  %880 = vmatpush.msra.mxu0 0.0
  %881 = vmatpush.msra.mxu0 0.0
  %882 = vmatpush.msra.mxu0 0.0
  %883 = vmatpush.msra.mxu0 0.0
  %884 = vmatpush.msra.mxu0 0.0
  %885 = vmatpush.msra.mxu0 0.0
  %886 = vmatpush.msra.mxu0 0.0
  %887 = vmatpush.msra.mxu0 0.0
  %888 = vmatpush.msra.mxu0 0.0
  %889 = vmatpush.msra.mxu0 0.0
  %890 = vmatpush.msra.mxu0 %v877
  %891 = vmatpush.msra.mxu0 %v876
  %892 = vmatpush.msra.mxu0 %v875
  %893 = vmatpush.msra.mxu0 %v874
  %894 = vmatmul.f32.gmra.mxu0 %v809
  %v895 = vpop.f32.mrf.mxu0
  %v896 = vadd.f32 0.0, %v895
  %897 = vdwg.mxu0
  %v898 = vadd.f32 %v873, %v896
  %v899 = vmul.f32 %v898, %v129
  %v900 = vtanh.pop %v899
  %v901 = vadd.f32 %v900, 1.0
  %v902 = vmul.f32 %v901, 0.5
  %v903 = vsel %vm169, %v902, %v900
  %v904 = vmul.f32 %v903, %v769
  %906 = vrot.lane.b32.xlu0 %v903, 32
  %v907 = vpop.permute.xlu0 %906
  %v909 = vmul.f32 %v903, %v907
  %911 = vrot.lane.b32.xlu0 %v909, 32
  %v912 = vpop.permute.xlu0 %911
  %v914 = vadd.f32 %v904, %v912
  %v915 = vtanh.pop %v914
  %917 = vrot.lane.b32.xlu0 %v915, 32
  %v918 = vpop.permute.xlu0 %917
  %v920 = vmul.f32 %v903, %v918
  %v921 = vld [vmem:[%s4] sm:$0xff]
  %v922 = vld [vmem:[%s4 + $0x8] sm:$0xff]
  %v923 = vld [vmem:[%s4 + $0x10] sm:$0xff]
  %v924 = vld [vmem:[%s4 + $0x18] sm:$0xff]
  %v925 = vld [vmem:[%s5] sm:$0xff]
  %v926 = vld [vmem:[%s5 + $0x8] sm:$0xff]
  %v927 = vld [vmem:[%s5 + $0x10] sm:$0xff]
  %v928 = vld [vmem:[%s5 + $0x18] sm:$0xff]
  %v929 = vsel %vm139, %v860, 0
  %931 = vmatpush.msra.mxu0 0.0
  %932 = vmatpush.msra.mxu0 0.0
  %933 = vmatpush.msra.mxu0 0.0
  %934 = vmatpush.msra.mxu0 0.0
  %935 = vmatpush.msra.mxu0 0.0
  %936 = vmatpush.msra.mxu0 0.0
  %937 = vmatpush.msra.mxu0 0.0
  %938 = vmatpush.msra.mxu0 0.0
  %939 = vmatpush.msra.mxu0 0.0
  %940 = vmatpush.msra.mxu0 0.0
  %941 = vmatpush.msra.mxu0 0.0
  %942 = vmatpush.msra.mxu0 0.0
  %943 = vmatpush.msra.mxu0 %v928
  %944 = vmatpush.msra.mxu0 %v927
  %945 = vmatpush.msra.mxu0 %v926
  %946 = vmatpush.msra.mxu0 %v925
  %947 = vmatmul.f32.gmra.mxu0 %v929
  %v948 = vpop.f32.mrf.mxu0
  %v949 = vadd.f32 0.0, %v948
  %950 = vdwg.mxu0
  %952 = vrot.lane.b32.xlu0 %v920, 64
  %v953 = vpop.permute.xlu0 %952
  %v954 = vsel %vm139, %v953, 0
  %956 = vmatpush.msra.mxu0 0.0
  %957 = vmatpush.msra.mxu0 0.0
  %958 = vmatpush.msra.mxu0 0.0
  %959 = vmatpush.msra.mxu0 0.0
  %960 = vmatpush.msra.mxu0 0.0
  %961 = vmatpush.msra.mxu0 0.0
  %962 = vmatpush.msra.mxu0 0.0
  %963 = vmatpush.msra.mxu0 0.0
  %964 = vmatpush.msra.mxu0 0.0
  %965 = vmatpush.msra.mxu0 0.0
  %966 = vmatpush.msra.mxu0 0.0
  %967 = vmatpush.msra.mxu0 0.0
  %968 = vmatpush.msra.mxu0 %v924
  %969 = vmatpush.msra.mxu0 %v923
  %970 = vmatpush.msra.mxu0 %v922
  %971 = vmatpush.msra.mxu0 %v921
  %972 = vmatmul.f32.gmra.mxu0 %v954
  %v973 = vpop.f32.mrf.mxu0
  %v974 = vadd.f32 %v949, %v973
  %975 = vdwg.mxu0
  %v976 = vld [vmem:[%s6] sm:$0x1]
  %v978 = vperm.slane %v976, 0
  %v980 = vadd.f32 %v974, %v978
  %v981 = vmul.f32 %v980, %v129
  %v982 = vtanh.pop %v981
  %v983 = vadd.f32 %v982, 1.0
  %v984 = vmul.f32 %v983, 0.5
  %v985 = vsel %vm169, %v984, %v982
  %v986 = vmul.f32 %v985, %v851
  %988 = vrot.lane.b32.xlu0 %v985, 32
  %v989 = vpop.permute.xlu0 %988
  %v991 = vmul.f32 %v985, %v989
  %993 = vrot.lane.b32.xlu0 %v991, 32
  %v994 = vpop.permute.xlu0 %993
  %v996 = vadd.f32 %v986, %v994
  %v997 = vtanh.pop %v996
  %999 = vrot.lane.b32.xlu0 %v997, 32
  %v1000 = vpop.permute.xlu0 %999
  %v1002 = vmul.f32 %v985, %v1000
  %1004 = vrot.lane.b32.xlu0 %v1002, 64
  %v1005 = vpop.permute.xlu0 %1004
  %s1007 = scalar_lea.vmem %s7, 40
  %1008 = vst.msk [vmem:[%s1007] sm:$0xff] %vm139, %v1005
  %s1009 = sadd.s32 %s284, 5
  %p1010 = scmp.eq.s32.totalorder %s1009, 7
  // Predicated region
  $region54: #{my_lstm_forward.1} parent=0 // pred_check
    %p1011 = pneg %p1010
  $region55: #{my_lstm_forward.1} parent=0 // pred_check_branch
    %1013 = sbr.rel (%p1011) target = $region57
  $region56: #{my_lstm_forward.1} parent=0 // pred_region
    %1015 = vst.msk [vmem:[%s8] sm:$0xff] %vm139, %v953
    %1016 = vst.msk [vmem:[%s9] sm:$0xff] %vm139, %v1005
  $region57: #{my_lstm_forward.1} parent=0 // pred_fallthru
    _
  %s1017 = scalar_lea.vmem [#allocation2], 48
  %v1018 = vld [vmem:[%s1017] sm:$0xff]
  %v1019 = vld [vmem:[%s2] sm:$0xff]
  %v1020 = vld [vmem:[%s2 + $0x8] sm:$0xff]
  %v1021 = vld [vmem:[%s2 + $0x10] sm:$0xff]
  %v1022 = vld [vmem:[%s2 + $0x18] sm:$0xff]
  %1023 = vmatpush.msra.mxu0 0.0
  %1024 = vmatpush.msra.mxu0 0.0
  %1025 = vmatpush.msra.mxu0 0.0
  %1026 = vmatpush.msra.mxu0 0.0
  %1027 = vmatpush.msra.mxu0 0.0
  %1028 = vmatpush.msra.mxu0 0.0
  %1029 = vmatpush.msra.mxu0 0.0
  %1030 = vmatpush.msra.mxu0 0.0
  %1031 = vmatpush.msra.mxu0 0.0
  %1032 = vmatpush.msra.mxu0 0.0
  %1033 = vmatpush.msra.mxu0 0.0
  %1034 = vmatpush.msra.mxu0 0.0
  %1035 = vmatpush.msra.mxu0 %v1022
  %1036 = vmatpush.msra.mxu0 %v1021
  %1037 = vmatpush.msra.mxu0 %v1020
  %1038 = vmatpush.msra.mxu0 %v1019
  %1039 = vmatmul.f32.gmra.mxu0 %v954
  %v1040 = vpop.f32.mrf.mxu0
  %v1041 = vadd.f32 0.0, %v1040
  %1042 = vdwg.mxu0
  %v1043 = vadd.f32 %v1018, %v1041
  %v1044 = vmul.f32 %v1043, %v129
  %v1045 = vtanh.pop %v1044
  %v1046 = vadd.f32 %v1045, 1.0
  %v1047 = vmul.f32 %v1046, 0.5
  %v1048 = vsel %vm169, %v1047, %v1045
  %v1049 = vmul.f32 %v1048, %v914
  %1051 = vrot.lane.b32.xlu0 %v1048, 32
  %v1052 = vpop.permute.xlu0 %1051
  %v1054 = vmul.f32 %v1048, %v1052
  %1056 = vrot.lane.b32.xlu0 %v1054, 32
  %v1057 = vpop.permute.xlu0 %1056
  %v1059 = vadd.f32 %v1049, %v1057
  %v1060 = vtanh.pop %v1059
  %1062 = vrot.lane.b32.xlu0 %v1060, 32
  %v1063 = vpop.permute.xlu0 %1062
  %v1065 = vmul.f32 %v1048, %v1063
  %v1066 = vld [vmem:[%s4] sm:$0xff]
  %v1067 = vld [vmem:[%s4 + $0x8] sm:$0xff]
  %v1068 = vld [vmem:[%s4 + $0x10] sm:$0xff]
  %v1069 = vld [vmem:[%s4 + $0x18] sm:$0xff]
  %v1070 = vld [vmem:[%s5] sm:$0xff]
  %v1071 = vld [vmem:[%s5 + $0x8] sm:$0xff]
  %v1072 = vld [vmem:[%s5 + $0x10] sm:$0xff]
  %v1073 = vld [vmem:[%s5 + $0x18] sm:$0xff]
  %v1074 = vsel %vm139, %v1005, 0
  %1076 = vmatpush.msra.mxu0 0.0
  %1077 = vmatpush.msra.mxu0 0.0
  %1078 = vmatpush.msra.mxu0 0.0
  %1079 = vmatpush.msra.mxu0 0.0
  %1080 = vmatpush.msra.mxu0 0.0
  %1081 = vmatpush.msra.mxu0 0.0
  %1082 = vmatpush.msra.mxu0 0.0
  %1083 = vmatpush.msra.mxu0 0.0
  %1084 = vmatpush.msra.mxu0 0.0
  %1085 = vmatpush.msra.mxu0 0.0
  %1086 = vmatpush.msra.mxu0 0.0
  %1087 = vmatpush.msra.mxu0 0.0
  %1088 = vmatpush.msra.mxu0 %v1073
  %1089 = vmatpush.msra.mxu0 %v1072
  %1090 = vmatpush.msra.mxu0 %v1071
  %1091 = vmatpush.msra.mxu0 %v1070
  %1092 = vmatmul.f32.gmra.mxu0 %v1074
  %v1093 = vpop.f32.mrf.mxu0
  %v1094 = vadd.f32 0.0, %v1093
  %1095 = vdwg.mxu0
  %1097 = vrot.lane.b32.xlu0 %v1065, 64
  %v1098 = vpop.permute.xlu0 %1097
  %v1099 = vsel %vm139, %v1098, 0
  %1101 = vmatpush.msra.mxu0 0.0
  %1102 = vmatpush.msra.mxu0 0.0
  %1103 = vmatpush.msra.mxu0 0.0
  %1104 = vmatpush.msra.mxu0 0.0
  %1105 = vmatpush.msra.mxu0 0.0
  %1106 = vmatpush.msra.mxu0 0.0
  %1107 = vmatpush.msra.mxu0 0.0
  %1108 = vmatpush.msra.mxu0 0.0
  %1109 = vmatpush.msra.mxu0 0.0
  %1110 = vmatpush.msra.mxu0 0.0
  %1111 = vmatpush.msra.mxu0 0.0
  %1112 = vmatpush.msra.mxu0 0.0
  %1113 = vmatpush.msra.mxu0 %v1069
  %1114 = vmatpush.msra.mxu0 %v1068
  %1115 = vmatpush.msra.mxu0 %v1067
  %1116 = vmatpush.msra.mxu0 %v1066
  %1117 = vmatmul.f32.gmra.mxu0 %v1099
  %v1118 = vpop.f32.mrf.mxu0
  %v1119 = vadd.f32 %v1094, %v1118
  %1120 = vdwg.mxu0
  %v1121 = vld [vmem:[%s6] sm:$0x1]
  %v1123 = vperm.slane %v1121, 0
  %v1125 = vadd.f32 %v1119, %v1123
  %v1126 = vmul.f32 %v1125, %v129
  %v1127 = vtanh.pop %v1126
  %v1128 = vadd.f32 %v1127, 1.0
  %v1129 = vmul.f32 %v1128, 0.5
  %v1130 = vsel %vm169, %v1129, %v1127
  %v1131 = vmul.f32 %v1130, %v996
  %1133 = vrot.lane.b32.xlu0 %v1130, 32
  %v1134 = vpop.permute.xlu0 %1133
  %v1136 = vmul.f32 %v1130, %v1134
  %1138 = vrot.lane.b32.xlu0 %v1136, 32
  %v1139 = vpop.permute.xlu0 %1138
  %v1141 = vadd.f32 %v1131, %v1139
  %v1142 = vtanh.pop %v1141
  %1144 = vrot.lane.b32.xlu0 %v1142, 32
  %v1145 = vpop.permute.xlu0 %1144
  %v1147 = vmul.f32 %v1130, %v1145
  %1149 = vrot.lane.b32.xlu0 %v1147, 64
  %v1150 = vpop.permute.xlu0 %1149
  %s1152 = scalar_lea.vmem %s7, 48
  %1153 = vst.msk [vmem:[%s1152] sm:$0xff] %vm139, %v1150
  %s1154 = sadd.s32 %s284, 6
  %p1155 = scmp.eq.s32.totalorder %s1154, 7
  // Predicated region
  $region58: #{my_lstm_forward.1} parent=0 // pred_check
    %p1156 = pneg %p1155
  $region59: #{my_lstm_forward.1} parent=0 // pred_check_branch
    %1158 = sbr.rel (%p1156) target = $region61
  $region60: #{my_lstm_forward.1} parent=0 // pred_region
    %1160 = vst.msk [vmem:[%s8] sm:$0xff] %vm139, %v1098
    %1161 = vst.msk [vmem:[%s9] sm:$0xff] %vm139, %v1150
  $region61: #{my_lstm_forward.1} parent=0 // pred_fallthru
    _
  %s1162 = scalar_lea.vmem [#allocation2], 56
  %v1163 = vld [vmem:[%s1162] sm:$0xff]
  %v1164 = vld [vmem:[%s2] sm:$0xff]
  %v1165 = vld [vmem:[%s2 + $0x8] sm:$0xff]
  %v1166 = vld [vmem:[%s2 + $0x10] sm:$0xff]
  %v1167 = vld [vmem:[%s2 + $0x18] sm:$0xff]
  %1168 = vmatpush.msra.mxu0 0.0
  %1169 = vmatpush.msra.mxu0 0.0
  %1170 = vmatpush.msra.mxu0 0.0
  %1171 = vmatpush.msra.mxu0 0.0
  %1172 = vmatpush.msra.mxu0 0.0
  %1173 = vmatpush.msra.mxu0 0.0
  %1174 = vmatpush.msra.mxu0 0.0
  %1175 = vmatpush.msra.mxu0 0.0
  %1176 = vmatpush.msra.mxu0 0.0
  %1177 = vmatpush.msra.mxu0 0.0
  %1178 = vmatpush.msra.mxu0 0.0
  %1179 = vmatpush.msra.mxu0 0.0
  %1180 = vmatpush.msra.mxu0 %v1167
  %1181 = vmatpush.msra.mxu0 %v1166
  %1182 = vmatpush.msra.mxu0 %v1165
  %1183 = vmatpush.msra.mxu0 %v1164
  %1184 = vmatmul.f32.gmra.mxu0 %v1099
  %v1185 = vpop.f32.mrf.mxu0
  %v1186 = vadd.f32 0.0, %v1185
  %1187 = vdwg.mxu0
  %v1188 = vadd.f32 %v1163, %v1186
  %v1189 = vmul.f32 %v1188, %v129
  %v1190 = vtanh.pop %v1189
  %v1191 = vadd.f32 %v1190, 1.0
  %v1192 = vmul.f32 %v1191, 0.5
  %v1193 = vsel %vm169, %v1192, %v1190
  %v1194 = vmul.f32 %v1193, %v1059
  %1196 = vrot.lane.b32.xlu0 %v1193, 32
  %v1197 = vpop.permute.xlu0 %1196
  %v1199 = vmul.f32 %v1193, %v1197
  %1201 = vrot.lane.b32.xlu0 %v1199, 32
  %v1202 = vpop.permute.xlu0 %1201
  %v1204 = vadd.f32 %v1194, %v1202
  %v1205 = vtanh.pop %v1204
  %1207 = vrot.lane.b32.xlu0 %v1205, 32
  %v1208 = vpop.permute.xlu0 %1207
  %v1210 = vmul.f32 %v1193, %v1208
  %v1211 = vld [vmem:[%s4] sm:$0xff]
  %v1212 = vld [vmem:[%s4 + $0x8] sm:$0xff]
  %v1213 = vld [vmem:[%s4 + $0x10] sm:$0xff]
  %v1214 = vld [vmem:[%s4 + $0x18] sm:$0xff]
  %v1215 = vld [vmem:[%s5] sm:$0xff]
  %v1216 = vld [vmem:[%s5 + $0x8] sm:$0xff]
  %v1217 = vld [vmem:[%s5 + $0x10] sm:$0xff]
  %v1218 = vld [vmem:[%s5 + $0x18] sm:$0xff]
  %v1219 = vsel %vm139, %v1150, 0
  %1221 = vmatpush.msra.mxu0 0.0
  %1222 = vmatpush.msra.mxu0 0.0
  %1223 = vmatpush.msra.mxu0 0.0
  %1224 = vmatpush.msra.mxu0 0.0
  %1225 = vmatpush.msra.mxu0 0.0
  %1226 = vmatpush.msra.mxu0 0.0
  %1227 = vmatpush.msra.mxu0 0.0
  %1228 = vmatpush.msra.mxu0 0.0
  %1229 = vmatpush.msra.mxu0 0.0
  %1230 = vmatpush.msra.mxu0 0.0
  %1231 = vmatpush.msra.mxu0 0.0
  %1232 = vmatpush.msra.mxu0 0.0
  %1233 = vmatpush.msra.mxu0 %v1218
  %1234 = vmatpush.msra.mxu0 %v1217
  %1235 = vmatpush.msra.mxu0 %v1216
  %1236 = vmatpush.msra.mxu0 %v1215
  %1237 = vmatmul.f32.gmra.mxu0 %v1219
  %v1238 = vpop.f32.mrf.mxu0
  %v1239 = vadd.f32 0.0, %v1238
  %1240 = vdwg.mxu0
  %1242 = vrot.lane.b32.xlu0 %v1210, 64
  %v1243 = vpop.permute.xlu0 %1242
  %v1244 = vsel %vm139, %v1243, 0
  %1246 = vmatpush.msra.mxu0 0.0
  %1247 = vmatpush.msra.mxu0 0.0
  %1248 = vmatpush.msra.mxu0 0.0
  %1249 = vmatpush.msra.mxu0 0.0
  %1250 = vmatpush.msra.mxu0 0.0
  %1251 = vmatpush.msra.mxu0 0.0
  %1252 = vmatpush.msra.mxu0 0.0
  %1253 = vmatpush.msra.mxu0 0.0
  %1254 = vmatpush.msra.mxu0 0.0
  %1255 = vmatpush.msra.mxu0 0.0
  %1256 = vmatpush.msra.mxu0 0.0
  %1257 = vmatpush.msra.mxu0 0.0
  %1258 = vmatpush.msra.mxu0 %v1214
  %1259 = vmatpush.msra.mxu0 %v1213
  %1260 = vmatpush.msra.mxu0 %v1212
  %1261 = vmatpush.msra.mxu0 %v1211
  %1262 = vmatmul.f32.gmra.mxu0 %v1244
  %v1263 = vpop.f32.mrf.mxu0
  %v1264 = vadd.f32 %v1239, %v1263
  %1265 = vdwg.mxu0
  %v1266 = vld [vmem:[%s6] sm:$0x1]
  %v1268 = vperm.slane %v1266, 0
  %v1270 = vadd.f32 %v1264, %v1268
  %v1271 = vmul.f32 %v1270, %v129
  %v1272 = vtanh.pop %v1271
  %v1273 = vadd.f32 %v1272, 1.0
  %v1274 = vmul.f32 %v1273, 0.5
  %v1275 = vsel %vm169, %v1274, %v1272
  %v1276 = vmul.f32 %v1275, %v1141
  %1278 = vrot.lane.b32.xlu0 %v1275, 32
  %v1279 = vpop.permute.xlu0 %1278
  %v1281 = vmul.f32 %v1275, %v1279
  %1283 = vrot.lane.b32.xlu0 %v1281, 32
  %v1284 = vpop.permute.xlu0 %1283
  %v1286 = vadd.f32 %v1276, %v1284
  %v1287 = vtanh.pop %v1286
  %1289 = vrot.lane.b32.xlu0 %v1287, 32
  %v1290 = vpop.permute.xlu0 %1289
  %v1292 = vmul.f32 %v1275, %v1290
  %1294 = vrot.lane.b32.xlu0 %v1292, 64
  %v1295 = vpop.permute.xlu0 %1294
  %s1297 = scalar_lea.vmem %s7, 56
  %1298 = vst.msk [vmem:[%s1297] sm:$0xff] %vm139, %v1295
  %s1299 = sadd.s32 %s284, 7
  %p1300 = scmp.eq.s32.totalorder %s1299, 7
  // Predicated region
  $region62: #{my_lstm_forward.1} parent=0 // pred_check
    %p1301 = pneg %p1300
  $region63: #{my_lstm_forward.1} parent=0 // pred_check_branch
    %1303 = sbr.rel (%p1301) target = $region65
  $region64: #{my_lstm_forward.1} parent=0 // pred_region
    %1305 = vst.msk [vmem:[%s8] sm:$0xff] %vm139, %v1243
    %1306 = vst.msk [vmem:[%s9] sm:$0xff] %vm139, %v1295
  $region65: #{my_lstm_forward.1} parent=0 // pred_fallthru
    _
  %1308 = vst.msk [vmem:[#allocation3] sm:$0xff] %vm139, %v1243
  %1310 = vrot.lane.b32.xlu0 %v1204, 96
  %v1311 = vpop.permute.xlu0 %1310
  %1313 = vst.msk [vmem:[#allocation4] sm:$0xff] %vm139, %v1311
  %1314 = vst.msk [vmem:[#allocation5] sm:$0xff] %vm139, %v1295
  %1316 = vrot.lane.b32.xlu0 %v1286, 96
  %v1317 = vpop.permute.xlu0 %1316
  %1319 = vst.msk [vmem:[#allocation6] sm:$0xff] %vm139, %v1317
  // Predicated region
  $region66: #{my_lstm_forward.1} parent=0 // pred_check
    _
  $region67: #{my_lstm_forward.1} parent=0 // pred_check_branch
    %1321 = sbr.rel (0) target = $region69
  $region68: #{my_lstm_forward.1} parent=0 // pred_region
    _
  $region69: #{my_lstm_forward.1} parent=0 // pred_fallthru
    _
  // Predicated region
  $region70: #{my_lstm_forward.1} parent=0 // pred_check
    _
  $region71: #{my_lstm_forward.1} parent=0 // pred_check_branch
    %1323 = sbr.rel (0) target = $region73
  $region72: #{my_lstm_forward.1} parent=0 // pred_region
    _
  $region73: #{my_lstm_forward.1} parent=0 // pred_fallthru
    _
  // Predicated region
  $region74: #{my_lstm_forward.1} parent=0 // pred_check
    _
  $region75: #{my_lstm_forward.1} parent=0 // pred_check_branch
    %1325 = sbr.rel (0) target = $region77
  $region76: #{my_lstm_forward.1} parent=0 // pred_region
    _
  $region77: #{my_lstm_forward.1} parent=0 // pred_fallthru
    _
  // Predicated region
  $region78: #{my_lstm_forward.1} parent=0 // pred_check
    _
  $region79: #{my_lstm_forward.1} parent=0 // pred_check_branch
    %1327 = sbr.rel (0) target = $region81
  $region80: #{my_lstm_forward.1} parent=0 // pred_region
    _
  $region81: #{my_lstm_forward.1} parent=0 // pred_fallthru
    _
  // Predicated region
  $region82: #{my_lstm_forward.1} parent=0 // pred_check
    _
  $region83: #{my_lstm_forward.1} parent=0 // pred_check_branch
    %1329 = sbr.rel (0) target = $region85
  $region84: #{my_lstm_forward.1} parent=0 // pred_region
    _
  $region85: #{my_lstm_forward.1} parent=0 // pred_fallthru
    _
  // Predicated region
  $region86: #{my_lstm_forward.1} parent=0 // pred_check
    _
  $region87: #{my_lstm_forward.1} parent=0 // pred_check_branch
    %1331 = sbr.rel (0) target = $region89
  $region88: #{my_lstm_forward.1} parent=0 // pred_region
    _
  $region89: #{my_lstm_forward.1} parent=0 // pred_fallthru
    _

</llo_original>
